<compile_context>
chip_gen: v6e
topology: v6e:2x2x1
jax: 0.10.0
libtpu: 0.0.40
codegen_flags: <defaults>
</compile_context>

<pallas_src>
import math
import functools

import jax
import jax.numpy as jnp
from jax.experimental import pallas as pl
from jax.experimental.pallas import tpu as pltpu


# --------------------------------------------------------------------------------------
# Pallas kernels
# --------------------------------------------------------------------------------------

def layernorm_kernel(x_ref, g_ref, b_ref, o_ref):
    """o = LayerNorm(x) over last axis.  Block: x (1,S,H); g,b (1,H)."""
    x = x_ref[0].astype(jnp.float32)                       # (S, H)
    mean = jnp.mean(x, axis=-1, keepdims=True)
    var = jnp.mean((x - mean) ** 2, axis=-1, keepdims=True)
    xn = (x - mean) * jax.lax.rsqrt(var + 1e-12)
    o_ref[0] = (xn * g_ref[...].astype(jnp.float32)
                + b_ref[...].astype(jnp.float32)).astype(o_ref.dtype)


def attn_block_kernel(x_ref, mask_ref, wqkv_ref, bqkv_ref, wo_ref, bo_ref,
                      g_ref, b_ref, o_ref, *, num_heads):
    """Fused self-attention block for one batch element.

    x:(1,S,H) bf16, mask:(1,1,S) f32 (1=valid), wqkv:(H,3H) bf16, wo:(H,H) bf16.
    Does QKV projection -> per-head softmax attention (mask built in-kernel)
    -> per-head output projection accumulate -> +residual -> LayerNorm.
    """
    x = x_ref[0]                                           # (S, H) bf16
    S, H = x.shape
    Dh = H // num_heads
    scale = 1.0 / math.sqrt(Dh)

    # Fused QKV projection: one MXU pass over the concatenated (H, 3H) weight.
    qkv = jnp.dot(x, wqkv_ref[...], preferred_element_type=jnp.float32)
    qkv = qkv + bqkv_ref[...].astype(jnp.float32)          # (S, 3H) f32

    # Additive key mask built on the VPU from the (1, S) validity row (f32,
    # applied before the max-subtraction so bf16 activations can't overflow).
    mbias = (1.0 - mask_ref[0].astype(jnp.float32)) * -1e9  # (1, S)

    acc = jnp.zeros((S, H), jnp.float32)
    for hh in range(num_heads):                            # static unroll over heads
        q = qkv[:, hh * Dh:(hh + 1) * Dh].astype(jnp.bfloat16)
        k = qkv[:, H + hh * Dh:H + (hh + 1) * Dh].astype(jnp.bfloat16)
        v = qkv[:, 2 * H + hh * Dh:2 * H + (hh + 1) * Dh].astype(jnp.bfloat16)

        s = jax.lax.dot_general(q, k, (((1,), (1,)), ((), ())),
                                preferred_element_type=jnp.float32)  # (S, S)
        s = s * scale + mbias
        m = jnp.max(s, axis=-1, keepdims=True)
        p = jnp.exp(s - m)
        p = p * pl.reciprocal(jnp.sum(p, axis=-1, keepdims=True), approx=True)

        ctx_h = jnp.dot(p.astype(jnp.bfloat16), v,
                        preferred_element_type=jnp.float32)          # (S, Dh)
        # Fused output projection: accumulate ctx_h @ Wo[rows of this head].
        wo_h = wo_ref[pl.ds(hh * Dh, Dh), :]                          # (Dh, H) bf16
        acc = acc + jnp.dot(ctx_h.astype(jnp.bfloat16), wo_h,
                            preferred_element_type=jnp.float32)

    y = acc + bo_ref[...].astype(jnp.float32) + x.astype(jnp.float32)  # +residual
    mean = jnp.mean(y, axis=-1, keepdims=True)
    var = jnp.mean((y - mean) ** 2, axis=-1, keepdims=True)
    yn = (y - mean) * jax.lax.rsqrt(var + 1e-12)
    o_ref[0] = (yn * g_ref[...].astype(jnp.float32)
                + b_ref[...].astype(jnp.float32)).astype(o_ref.dtype)


def ffn_block_kernel(x_ref, w1_ref, b1_ref, w2_ref, b2_ref, g_ref, b_ref, o_ref):
    """Fused FFN block: LN(GELU(x@W1+b1)@W2 + b2 + x).  Block x:(1,S,H) bf16."""
    x = x_ref[0]                                           # (S, H) bf16
    h = jnp.dot(x, w1_ref[...], preferred_element_type=jnp.float32) \
        + b1_ref[...].astype(jnp.float32)                  # (S, I) f32
    c = math.sqrt(2.0 / math.pi)
    a = 0.5 * h * (1.0 + jnp.tanh(c * (h + 0.044715 * h * h * h)))   # tanh-GELU, f32
    y = jnp.dot(a.astype(jnp.bfloat16), w2_ref[...],
                preferred_element_type=jnp.float32) + b2_ref[...].astype(jnp.float32)
    y = y + x.astype(jnp.float32)                          # residual
    mean = jnp.mean(y, axis=-1, keepdims=True)
    var = jnp.mean((y - mean) ** 2, axis=-1, keepdims=True)
    yn = (y - mean) * jax.lax.rsqrt(var + 1e-12)
    o_ref[0] = (yn * g_ref[...].astype(jnp.float32)
                + b_ref[...].astype(jnp.float32)).astype(o_ref.dtype)


def head_kernel(x_ref, w_ref, b_ref, o_ref):
    """Classifier head: o = x @ w + b (tiny, single block)."""
    x = x_ref[...].astype(jnp.float32)
    w = w_ref[...].astype(jnp.float32)
    o_ref[...] = (jnp.dot(x, w, preferred_element_type=jnp.float32)
                  + b_ref[...].astype(jnp.float32)).astype(o_ref.dtype)


# --------------------------------------------------------------------------------------
# pallas_call wrappers
# --------------------------------------------------------------------------------------

_COMPILER_PARAMS = pltpu.CompilerParams(
    dimension_semantics=("parallel",),          # batch axis -> sharded across v7x's 2 TCs
    vmem_limit_bytes=48 * 1024 * 1024,          # explicit, < v7x 64 MiB physical VMEM
)


def _per_batch_call(kernel, out_shape, batch, *args):
    """grid=(B,): 3-D args with a leading batch dim get a (1, d1, d2) block per grid
    step; 2-D args (weights / biases / LN params) are full-array VMEM-resident blocks."""
    def spec(a):
        if a.ndim == 3 and a.shape[0] == batch:
            return pl.BlockSpec((1,) + a.shape[1:], lambda b: (b, 0, 0))
        return pl.BlockSpec(a.shape, lambda b, n=a.ndim: (0,) * n)

    return pl.pallas_call(
        kernel,
        out_shape=out_shape,
        grid=(batch,),
        in_specs=[spec(a) for a in args],
        out_specs=pl.BlockSpec((1,) + out_shape.shape[1:], lambda b: (b, 0, 0)),
        compiler_params=_COMPILER_PARAMS,
    )(*args)


def layernorm(x, g, b):
    B, S, H = x.shape
    return _per_batch_call(layernorm_kernel,
                           jax.ShapeDtypeStruct((B, S, H), jnp.bfloat16),
                           B, x, g, b)


def attn_block(h, mask, wqkv, bqkv, wo, bo, g, b, *, num_heads):
    B, S, H = h.shape
    kernel = functools.partial(attn_block_kernel, num_heads=num_heads)
    return _per_batch_call(kernel,
                           jax.ShapeDtypeStruct((B, S, H), jnp.bfloat16),
                           B, h, mask, wqkv, bqkv, wo, bo, g, b)


def ffn_block(h, w1, b1, w2, b2, g, b):
    B, S, H = h.shape
    return _per_batch_call(ffn_block_kernel,
                           jax.ShapeDtypeStruct((B, S, H), jnp.bfloat16),
                           B, h, w1, b1, w2, b2, g, b)


def classifier_head(cls, w, b):
    B = cls.shape[0]
    C = w.shape[1]
    return pl.pallas_call(
        head_kernel,
        out_shape=jax.ShapeDtypeStruct((B, C), jnp.float32),
        in_specs=[pl.BlockSpec(memory_space=pltpu.MemorySpace.VMEM)] * 3,
        out_specs=pl.BlockSpec(memory_space=pltpu.MemorySpace.VMEM),
    )(cls, w, b)


# --------------------------------------------------------------------------------------
# Model: Electra-style encoder + classifier head (TextOnlyModel.forward)
# --------------------------------------------------------------------------------------

class Config:
    vocab_size = 100
    hidden = 32            # dim_text_repr (768 in the real model; small synthetic here)
    num_heads = 4
    num_layers = 2
    intermediate = 64
    max_pos = 16
    type_vocab = 2
    num_class = 2


def init_params(cfg, key):
    def norm(k, shape, dtype=jnp.float32):
        return (0.02 * jax.random.normal(k, shape)).astype(dtype)

    keys = iter(jax.random.split(key, 8 + cfg.num_layers * 8))
    H, I = cfg.hidden, cfg.intermediate
    params = {
        'word_emb': norm(next(keys), (cfg.vocab_size, H)),
        'pos_emb':  norm(next(keys), (cfg.max_pos, H)),
        'type_emb': norm(next(keys), (cfg.type_vocab, H)),
        'emb_ln_g': jnp.ones((1, H), jnp.float32),
        'emb_ln_b': jnp.zeros((1, H), jnp.float32),
        'cls_w':    norm(next(keys), (H, cfg.num_class)),
        'cls_b':    jnp.zeros((1, cfg.num_class), jnp.float32),
        'layers': [],
    }
    for _ in range(cfg.num_layers):
        params['layers'].append({
            # Q/K/V fused into a single (H, 3H) weight; big matrices stored bf16 (MXU
            # operands, halves HBM weight traffic); biases / LN params in f32.
            'wqkv': norm(next(keys), (H, 3 * H), jnp.bfloat16),
            'bqkv': jnp.zeros((1, 3 * H), jnp.float32),
            'wo':   norm(next(keys), (H, H), jnp.bfloat16),
            'bo':   jnp.zeros((1, H), jnp.float32),
            'ln1_g': jnp.ones((1, H), jnp.float32),
            'ln1_b': jnp.zeros((1, H), jnp.float32),
            'w1':   norm(next(keys), (H, I), jnp.bfloat16),
            'b1':   jnp.zeros((1, I), jnp.float32),
            'w2':   norm(next(keys), (I, H), jnp.bfloat16),
            'b2':   jnp.zeros((1, H), jnp.float32),
            'ln2_g': jnp.ones((1, H), jnp.float32),
            'ln2_b': jnp.zeros((1, H), jnp.float32),
        })
    return params


def text_only_forward(params, input_ids, attention_mask, token_type_ids, cfg):
    """Equivalent of TextOnlyModel.forward(x) with x = (_, text)."""
    B, S = input_ids.shape
    nH = cfg.num_heads

    # --- embeddings (gathers are XLA glue; LN runs in a Pallas kernel, no zero residual) ---
    emb = (params['word_emb'][input_ids]
           + params['pos_emb'][None, :S, :]
           + params['type_emb'][token_type_ids])                   # (B,S,H) f32
    h = layernorm(emb, params['emb_ln_g'], params['emb_ln_b'])     # (B,S,H) bf16

    # (B,S) key-validity mask; the O(S^2) additive mask is built inside the kernel.
    mask = attention_mask.astype(jnp.float32).reshape(B, 1, S)

    for lyr in params['layers']:
        h = attn_block(h, mask, lyr['wqkv'], lyr['bqkv'], lyr['wo'], lyr['bo'],
                       lyr['ln1_g'], lyr['ln1_b'], num_heads=nH)
        h = ffn_block(h, lyr['w1'], lyr['b1'], lyr['w2'], lyr['b2'],
                      lyr['ln2_g'], lyr['ln2_b'])

    # hidden_states[0][:, 0, :]  -> CLS token; dropout is identity at inference.
    cls = h[:, 0, :]                                               # (B, H) bf16
    logits = classifier_head(cls, params['cls_w'], params['cls_b'])  # (B, num_class) f32
    return logits


# --------------------------------------------------------------------------------------
# Main
# --------------------------------------------------------------------------------------

if __name__ == "__main__":
    cfg = Config()
    B, S = 2, 8

    key = jax.random.PRNGKey(0)
    k_param, k_ids = jax.random.split(key)

    params = init_params(cfg, k_param)

    input_ids = jax.random.randint(k_ids, (B, S), 0, cfg.vocab_size, dtype=jnp.int32)
    attention_mask = jnp.ones((B, S), jnp.int32).at[1, 6:].set(0)  # pad last 2 tokens of seq 1
    token_type_ids = jnp.zeros((B, S), jnp.int32)

    fwd = jax.jit(functools.partial(text_only_forward, cfg=cfg))
    logits = jax.block_until_ready(fwd(params, input_ids, attention_mask, token_type_ids))

    assert logits.shape == (B, cfg.num_class)
    assert bool(jnp.all(jnp.isfinite(logits)))
    print("KERNEL_OK")
</pallas_src>

<mosaic_0001>
module attributes {stable_mosaic.version = 11 : i64} {
  func.func @head_kernel(%arg0: memref<2x32xbf16, #tpu.memory_space<vmem>>, %arg1: memref<32x2xf32, #tpu.memory_space<vmem>>, %arg2: memref<1x2xf32, #tpu.memory_space<vmem>>, %arg3: memref<2x2xf32, #tpu.memory_space<vmem>>) attributes {dimension_semantics = [], scalar_prefetch = 0 : i64, scratch_operands = 0 : i64, tpu.core_type = #tpu.core_type<tc>} {
    %c0 = arith.constant 0 : index
    %c0_0 = arith.constant 0 : index
    %0 = vector.load %arg0[%c0, %c0_0] : memref<2x32xbf16, #tpu.memory_space<vmem>>, vector<2x32xbf16>
    %1 = arith.extf %0 : vector<2x32xbf16> to vector<2x32xf32>
    %c0_1 = arith.constant 0 : index
    %c0_2 = arith.constant 0 : index
    %2 = vector.load %arg1[%c0_1, %c0_2] : memref<32x2xf32, #tpu.memory_space<vmem>>, vector<32x2xf32>
    %cst = arith.constant dense<0.000000e+00> : vector<2x2xf32>
    %3 = tpu.matmul %1, %2, %cst {dimension_numbers = #tpu.dot_dimension_numbers<[1], [0], [0], [1], [0, 0, 1, 1], [], []>} : vector<2x32xf32>, vector<32x2xf32>, vector<2x2xf32> -> vector<2x2xf32>
    %c0_3 = arith.constant 0 : index
    %c0_4 = arith.constant 0 : index
    %4 = vector.load %arg2[%c0_3, %c0_4] : memref<1x2xf32, #tpu.memory_space<vmem>>, vector<1x2xf32>
    %5 = vector.broadcast %4 : vector<1x2xf32> to vector<2x2xf32>
    %6 = arith.addf %3, %5 : vector<2x2xf32>
    %c0_5 = arith.constant 0 : index
    %c0_6 = arith.constant 0 : index
    %7 = vector.load %arg3[%c0_5, %c0_6] : memref<2x2xf32, #tpu.memory_space<vmem>>, vector<2x2xf32>
    tpu.vector_store %arg3[%c0_5, %c0_6], %6 {strides = array<i32>} : memref<2x2xf32, #tpu.memory_space<vmem>>, vector<2x2xf32>,
    return
  }
}

module attributes {stable_mosaic.version = 11 : i64} {
  func.func @layernorm_kernel(%arg0: i32, %arg1: memref<1x8x32xf32, #tpu.memory_space<vmem>>, %arg2: memref<1x32xf32, #tpu.memory_space<vmem>>, %arg3: memref<1x32xf32, #tpu.memory_space<vmem>>, %arg4: memref<1x8x32xbf16, #tpu.memory_space<vmem>>) attributes {dimension_semantics = [#tpu.dimension_semantics<parallel>], iteration_bounds = array<i64: 2>, scalar_prefetch = 0 : i64, scratch_operands = 0 : i64, tpu.core_type = #tpu.core_type<tc>, window_params = [{transform_indices = @transform_0, window_bounds = array<i64: 1, 8, 32>}, {pipeline_mode = #tpu.pipeline_mode<synchronous>, transform_indices = @transform_1, window_bounds = array<i64: 1, 32>}, {pipeline_mode = #tpu.pipeline_mode<synchronous>, transform_indices = @transform_2, window_bounds = array<i64: 1, 32>}, {transform_indices = @transform_3, window_bounds = array<i64: 1, 8, 32>}]} {
    %c0 = arith.constant 0 : index
    %c0_0 = arith.constant 0 : index
    %c0_1 = arith.constant 0 : index
    %0 = vector.load %arg1[%c0, %c0_0, %c0_1] : memref<1x8x32xf32, #tpu.memory_space<vmem>>, vector<1x8x32xf32>
    %1 = vector.shape_cast %0 : vector<1x8x32xf32> to vector<8x32xf32>
    %cst = arith.constant dense<0.000000e+00> : vector<8xf32>
    %2 = vector.multi_reduction <add>, %1, %cst [1] : vector<8x32xf32> to vector<8xf32>
    %3 = vector.shape_cast %2 : vector<8xf32> to vector<8x1xf32>
    %cst_2 = arith.constant 3.200000e+01 : f32
    %4 = vector.broadcast %cst_2 : f32 to vector<8x1xf32>
    %5 = arith.divf %3, %4 : vector<8x1xf32>
    %6 = vector.broadcast %5 : vector<8x1xf32> to vector<8x32xf32>
    %7 = arith.subf %1, %6 : vector<8x32xf32>
    %8 = arith.mulf %7, %7 : vector<8x32xf32>
    %cst_3 = arith.constant dense<0.000000e+00> : vector<8xf32>
    %9 = vector.multi_reduction <add>, %8, %cst_3 [1] : vector<8x32xf32> to vector<8xf32>
    %10 = vector.shape_cast %9 : vector<8xf32> to vector<8x1xf32>
    %cst_4 = arith.constant 3.200000e+01 : f32
    %11 = vector.broadcast %cst_4 : f32 to vector<8x1xf32>
    %12 = arith.divf %10, %11 : vector<8x1xf32>
    %13 = vector.broadcast %5 : vector<8x1xf32> to vector<8x32xf32>
    %14 = arith.subf %1, %13 : vector<8x32xf32>
    %cst_5 = arith.constant 9.99999996E-13 : f32
    %15 = vector.broadcast %cst_5 : f32 to vector<8x1xf32>
    %16 = arith.addf %12, %15 : vector<8x1xf32>
    %17 = math.rsqrt %16 : vector<8x1xf32>
    %18 = vector.broadcast %17 : vector<8x1xf32> to vector<8x32xf32>
    %19 = arith.mulf %14, %18 : vector<8x32xf32>
    %c0_6 = arith.constant 0 : index
    %c0_7 = arith.constant 0 : index
    %20 = vector.load %arg2[%c0_6, %c0_7] : memref<1x32xf32, #tpu.memory_space<vmem>>, vector<1x32xf32>
    %21 = vector.broadcast %20 : vector<1x32xf32> to vector<8x32xf32>
    %22 = arith.mulf %19, %21 : vector<8x32xf32>
    %c0_8 = arith.constant 0 : index
    %c0_9 = arith.constant 0 : index
    %23 = vector.load %arg3[%c0_8, %c0_9] : memref<1x32xf32, #tpu.memory_space<vmem>>, vector<1x32xf32>
    %24 = vector.broadcast %23 : vector<1x32xf32> to vector<8x32xf32>
    %25 = arith.addf %22, %24 : vector<8x32xf32>
    %26 = arith.truncf %25 : vector<8x32xf32> to vector<8x32xbf16>
    %c0_10 = arith.constant 0 : index
    %c0_11 = arith.constant 0 : index
    %c0_12 = arith.constant 0 : index
    %27 = vector.load %arg4[%c0_10, %c0_11, %c0_12] : memref<1x8x32xbf16, #tpu.memory_space<vmem>>, vector<1x8x32xbf16>
    %28 = vector.shape_cast %27 : vector<1x8x32xbf16> to vector<8x32xbf16>
    %29 = vector.shape_cast %26 : vector<8x32xbf16> to vector<1x8x32xbf16>
    tpu.vector_store %arg4[%c0_10, %c0_11, %c0_12], %29 {strides = array<i32>} : memref<1x8x32xbf16, #tpu.memory_space<vmem>>, vector<1x8x32xbf16>,
    return
  }
  func.func @transform_0(%arg0: i32) -> (i32, i32, i32) {
    %c0_i32 = arith.constant 0 : i32
    %c0_i32_0 = arith.constant 0 : i32
    %c0_i32_1 = arith.constant 0 : i32
    return %arg0, %c0_i32, %c0_i32_0 : i32, i32, i32
  }
  func.func @transform_1(%arg0: i32) -> (i32, i32) {
    %c0_i32 = arith.constant 0 : i32
    %c0_i32_0 = arith.constant 0 : i32
    %c0_i32_1 = arith.constant 0 : i32
    return %c0_i32, %c0_i32_0 : i32, i32
  }
  func.func @transform_2(%arg0: i32) -> (i32, i32) {
    %c0_i32 = arith.constant 0 : i32
    %c0_i32_0 = arith.constant 0 : i32
    %c0_i32_1 = arith.constant 0 : i32
    return %c0_i32, %c0_i32_0 : i32, i32
  }
  func.func @transform_3(%arg0: i32) -> (i32, i32, i32) {
    %c0_i32 = arith.constant 0 : i32
    %c0_i32_0 = arith.constant 0 : i32
    %c0_i32_1 = arith.constant 0 : i32
    return %arg0, %c0_i32, %c0_i32_0 : i32, i32, i32
  }
}

module attributes {stable_mosaic.version = 11 : i64} {
  func.func @ffn_block_kernel(%arg0: i32, %arg1: memref<1x8x32xbf16, #tpu.memory_space<vmem>>, %arg2: memref<32x64xbf16, #tpu.memory_space<vmem>>, %arg3: memref<1x64xf32, #tpu.memory_space<vmem>>, %arg4: memref<64x32xbf16, #tpu.memory_space<vmem>>, %arg5: memref<1x32xf32, #tpu.memory_space<vmem>>, %arg6: memref<1x32xf32, #tpu.memory_space<vmem>>, %arg7: memref<1x32xf32, #tpu.memory_space<vmem>>, %arg8: memref<1x8x32xbf16, #tpu.memory_space<vmem>>) attributes {dimension_semantics = [#tpu.dimension_semantics<parallel>], iteration_bounds = array<i64: 2>, scalar_prefetch = 0 : i64, scratch_operands = 0 : i64, tpu.core_type = #tpu.core_type<tc>, window_params = [{transform_indices = @transform_0, window_bounds = array<i64: 1, 8, 32>}, {pipeline_mode = #tpu.pipeline_mode<synchronous>, transform_indices = @transform_1, window_bounds = array<i64: 32, 64>}, {pipeline_mode = #tpu.pipeline_mode<synchronous>, transform_indices = @transform_2, window_bounds = array<i64: 1, 64>}, {pipeline_mode = #tpu.pipeline_mode<synchronous>, transform_indices = @transform_3, window_bounds = array<i64: 64, 32>}, {pipeline_mode = #tpu.pipeline_mode<synchronous>, transform_indices = @transform_4, window_bounds = array<i64: 1, 32>}, {pipeline_mode = #tpu.pipeline_mode<synchronous>, transform_indices = @transform_5, window_bounds = array<i64: 1, 32>}, {pipeline_mode = #tpu.pipeline_mode<synchronous>, transform_indices = @transform_6, window_bounds = array<i64: 1, 32>}, {transform_indices = @transform_7, window_bounds = array<i64: 1, 8, 32>}]} {
    %c0 = arith.constant 0 : index
    %c0_0 = arith.constant 0 : index
    %c0_1 = arith.constant 0 : index
    %0 = vector.load %arg1[%c0, %c0_0, %c0_1] : memref<1x8x32xbf16, #tpu.memory_space<vmem>>, vector<1x8x32xbf16>
    %1 = vector.shape_cast %0 : vector<1x8x32xbf16> to vector<8x32xbf16>
    %c0_2 = arith.constant 0 : index
    %c0_3 = arith.constant 0 : index
    %2 = vector.load %arg2[%c0_2, %c0_3] : memref<32x64xbf16, #tpu.memory_space<vmem>>, vector<32x64xbf16>
    %cst = arith.constant dense<0.000000e+00> : vector<8x64xf32>
    %3 = tpu.matmul %1, %2, %cst {dimension_numbers = #tpu.dot_dimension_numbers<[1], [0], [0], [1], [0, 0, 1, 1], [], []>} : vector<8x32xbf16>, vector<32x64xbf16>, vector<8x64xf32> -> vector<8x64xf32>
    %c0_4 = arith.constant 0 : index
    %c0_5 = arith.constant 0 : index
    %4 = vector.load %arg3[%c0_4, %c0_5] : memref<1x64xf32, #tpu.memory_space<vmem>>, vector<1x64xf32>
    %5 = vector.broadcast %4 : vector<1x64xf32> to vector<8x64xf32>
    %6 = arith.addf %3, %5 : vector<8x64xf32>
    %cst_6 = arith.constant 5.000000e-01 : f32
    %7 = vector.broadcast %cst_6 : f32 to vector<8x64xf32>
    %8 = arith.mulf %7, %6 : vector<8x64xf32>
    %cst_7 = arith.constant 4.471500e-02 : f32
    %9 = vector.broadcast %cst_7 : f32 to vector<8x64xf32>
    %10 = arith.mulf %9, %6 : vector<8x64xf32>
    %11 = arith.mulf %10, %6 : vector<8x64xf32>
    %12 = arith.mulf %11, %6 : vector<8x64xf32>
    %13 = arith.addf %6, %12 : vector<8x64xf32>
    %cst_8 = arith.constant 0.797884583 : f32
    %14 = vector.broadcast %cst_8 : f32 to vector<8x64xf32>
    %15 = arith.mulf %14, %13 : vector<8x64xf32>
    %16 = math.tanh %15 : vector<8x64xf32>
    %cst_9 = arith.constant 1.000000e+00 : f32
    %17 = vector.broadcast %cst_9 : f32 to vector<8x64xf32>
    %18 = arith.addf %17, %16 : vector<8x64xf32>
    %19 = arith.mulf %8, %18 : vector<8x64xf32>
    %20 = arith.truncf %19 : vector<8x64xf32> to vector<8x64xbf16>
    %c0_10 = arith.constant 0 : index
    %c0_11 = arith.constant 0 : index
    %21 = vector.load %arg4[%c0_10, %c0_11] : memref<64x32xbf16, #tpu.memory_space<vmem>>, vector<64x32xbf16>
    %cst_12 = arith.constant dense<0.000000e+00> : vector<8x32xf32>
    %22 = tpu.matmul %20, %21, %cst_12 {dimension_numbers = #tpu.dot_dimension_numbers<[1], [0], [0], [1], [0, 0, 1, 1], [], []>} : vector<8x64xbf16>, vector<64x32xbf16>, vector<8x32xf32> -> vector<8x32xf32>
    %c0_13 = arith.constant 0 : index
    %c0_14 = arith.constant 0 : index
    %23 = vector.load %arg5[%c0_13, %c0_14] : memref<1x32xf32, #tpu.memory_space<vmem>>, vector<1x32xf32>
    %24 = vector.broadcast %23 : vector<1x32xf32> to vector<8x32xf32>
    %25 = arith.addf %22, %24 : vector<8x32xf32>
    %26 = arith.extf %1 : vector<8x32xbf16> to vector<8x32xf32>
    %27 = arith.addf %25, %26 : vector<8x32xf32>
    %cst_15 = arith.constant dense<0.000000e+00> : vector<8xf32>
    %28 = vector.multi_reduction <add>, %27, %cst_15 [1] : vector<8x32xf32> to vector<8xf32>
    %29 = vector.shape_cast %28 : vector<8xf32> to vector<8x1xf32>
    %cst_16 = arith.constant 3.200000e+01 : f32
    %30 = vector.broadcast %cst_16 : f32 to vector<8x1xf32>
    %31 = arith.divf %29, %30 : vector<8x1xf32>
    %32 = vector.broadcast %31 : vector<8x1xf32> to vector<8x32xf32>
    %33 = arith.subf %27, %32 : vector<8x32xf32>
    %34 = arith.mulf %33, %33 : vector<8x32xf32>
    %cst_17 = arith.constant dense<0.000000e+00> : vector<8xf32>
    %35 = vector.multi_reduction <add>, %34, %cst_17 [1] : vector<8x32xf32> to vector<8xf32>
    %36 = vector.shape_cast %35 : vector<8xf32> to vector<8x1xf32>
    %cst_18 = arith.constant 3.200000e+01 : f32
    %37 = vector.broadcast %cst_18 : f32 to vector<8x1xf32>
    %38 = arith.divf %36, %37 : vector<8x1xf32>
    %39 = vector.broadcast %31 : vector<8x1xf32> to vector<8x32xf32>
    %40 = arith.subf %27, %39 : vector<8x32xf32>
    %cst_19 = arith.constant 9.99999996E-13 : f32
    %41 = vector.broadcast %cst_19 : f32 to vector<8x1xf32>
    %42 = arith.addf %38, %41 : vector<8x1xf32>
    %43 = math.rsqrt %42 : vector<8x1xf32>
    %44 = vector.broadcast %43 : vector<8x1xf32> to vector<8x32xf32>
    %45 = arith.mulf %40, %44 : vector<8x32xf32>
    %c0_20 = arith.constant 0 : index
    %c0_21 = arith.constant 0 : index
    %46 = vector.load %arg6[%c0_20, %c0_21] : memref<1x32xf32, #tpu.memory_space<vmem>>, vector<1x32xf32>
    %47 = vector.broadcast %46 : vector<1x32xf32> to vector<8x32xf32>
    %48 = arith.mulf %45, %47 : vector<8x32xf32>
    %c0_22 = arith.constant 0 : index
    %c0_23 = arith.constant 0 : index
    %49 = vector.load %arg7[%c0_22, %c0_23] : memref<1x32xf32, #tpu.memory_space<vmem>>, vector<1x32xf32>
    %50 = vector.broadcast %49 : vector<1x32xf32> to vector<8x32xf32>
    %51 = arith.addf %48, %50 : vector<8x32xf32>
    %52 = arith.truncf %51 : vector<8x32xf32> to vector<8x32xbf16>
    %c0_24 = arith.constant 0 : index
    %c0_25 = arith.constant 0 : index
    %c0_26 = arith.constant 0 : index
    %53 = vector.load %arg8[%c0_24, %c0_25, %c0_26] : memref<1x8x32xbf16, #tpu.memory_space<vmem>>, vector<1x8x32xbf16>
    %54 = vector.shape_cast %53 : vector<1x8x32xbf16> to vector<8x32xbf16>
    %55 = vector.shape_cast %52 : vector<8x32xbf16> to vector<1x8x32xbf16>
    tpu.vector_store %arg8[%c0_24, %c0_25, %c0_26], %55 {strides = array<i32>} : memref<1x8x32xbf16, #tpu.memory_space<vmem>>, vector<1x8x32xbf16>,
    return
  }
  func.func @transform_0(%arg0: i32) -> (i32, i32, i32) {
    %c0_i32 = arith.constant 0 : i32
    %c0_i32_0 = arith.constant 0 : i32
    %c0_i32_1 = arith.constant 0 : i32
    return %arg0, %c0_i32, %c0_i32_0 : i32, i32, i32
  }
  func.func @transform_1(%arg0: i32) -> (i32, i32) {
    %c0_i32 = arith.constant 0 : i32
    %c0_i32_0 = arith.constant 0 : i32
    %c0_i32_1 = arith.constant 0 : i32
    return %c0_i32, %c0_i32_0 : i32, i32
  }
  func.func @transform_2(%arg0: i32) -> (i32, i32) {
    %c0_i32 = arith.constant 0 : i32
    %c0_i32_0 = arith.constant 0 : i32
    %c0_i32_1 = arith.constant 0 : i32
    return %c0_i32, %c0_i32_0 : i32, i32
  }
  func.func @transform_3(%arg0: i32) -> (i32, i32) {
    %c0_i32 = arith.constant 0 : i32
    %c0_i32_0 = arith.constant 0 : i32
    %c0_i32_1 = arith.constant 0 : i32
    return %c0_i32, %c0_i32_0 : i32, i32
  }
  func.func @transform_4(%arg0: i32) -> (i32, i32) {
    %c0_i32 = arith.constant 0 : i32
    %c0_i32_0 = arith.constant 0 : i32
    %c0_i32_1 = arith.constant 0 : i32
    return %c0_i32, %c0_i32_0 : i32, i32
  }
  func.func @transform_5(%arg0: i32) -> (i32, i32) {
    %c0_i32 = arith.constant 0 : i32
    %c0_i32_0 = arith.constant 0 : i32
    %c0_i32_1 = arith.constant 0 : i32
    return %c0_i32, %c0_i32_0 : i32, i32
  }
  func.func @transform_6(%arg0: i32) -> (i32, i32) {
    %c0_i32 = arith.constant 0 : i32
    %c0_i32_0 = arith.constant 0 : i32
    %c0_i32_1 = arith.constant 0 : i32
    return %c0_i32, %c0_i32_0 : i32, i32
  }
  func.func @transform_7(%arg0: i32) -> (i32, i32, i32) {
    %c0_i32 = arith.constant 0 : i32
    %c0_i32_0 = arith.constant 0 : i32
    %c0_i32_1 = arith.constant 0 : i32
    return %arg0, %c0_i32, %c0_i32_0 : i32, i32, i32
  }
}

module attributes {stable_mosaic.version = 11 : i64} {
  func.func @attn_block_kernel(%arg0: i32, %arg1: memref<1x8x32xbf16, #tpu.memory_space<vmem>>, %arg2: memref<1x1x8xf32, #tpu.memory_space<vmem>>, %arg3: memref<32x96xbf16, #tpu.memory_space<vmem>>, %arg4: memref<1x96xf32, #tpu.memory_space<vmem>>, %arg5: memref<32x32xbf16, #tpu.memory_space<vmem>>, %arg6: memref<1x32xf32, #tpu.memory_space<vmem>>, %arg7: memref<1x32xf32, #tpu.memory_space<vmem>>, %arg8: memref<1x32xf32, #tpu.memory_space<vmem>>, %arg9: memref<1x8x32xbf16, #tpu.memory_space<vmem>>) attributes {dimension_semantics = [#tpu.dimension_semantics<parallel>], iteration_bounds = array<i64: 2>, scalar_prefetch = 0 : i64, scratch_operands = 0 : i64, tpu.core_type = #tpu.core_type<tc>, window_params = [{transform_indices = @transform_0, window_bounds = array<i64: 1, 8, 32>}, {transform_indices = @transform_1, window_bounds = array<i64: 1, 1, 8>}, {pipeline_mode = #tpu.pipeline_mode<synchronous>, transform_indices = @transform_2, window_bounds = array<i64: 32, 96>}, {pipeline_mode = #tpu.pipeline_mode<synchronous>, transform_indices = @transform_3, window_bounds = array<i64: 1, 96>}, {pipeline_mode = #tpu.pipeline_mode<synchronous>, transform_indices = @transform_4, window_bounds = array<i64: 32, 32>}, {pipeline_mode = #tpu.pipeline_mode<synchronous>, transform_indices = @transform_5, window_bounds = array<i64: 1, 32>}, {pipeline_mode = #tpu.pipeline_mode<synchronous>, transform_indices = @transform_6, window_bounds = array<i64: 1, 32>}, {pipeline_mode = #tpu.pipeline_mode<synchronous>, transform_indices = @transform_7, window_bounds = array<i64: 1, 32>}, {transform_indices = @transform_8, window_bounds = array<i64: 1, 8, 32>}]} {
    %c0 = arith.constant 0 : index
    %c0_0 = arith.constant 0 : index
    %c0_1 = arith.constant 0 : index
    %0 = vector.load %arg1[%c0, %c0_0, %c0_1] : memref<1x8x32xbf16, #tpu.memory_space<vmem>>, vector<1x8x32xbf16>
    %1 = vector.shape_cast %0 : vector<1x8x32xbf16> to vector<8x32xbf16>
    %c0_2 = arith.constant 0 : index
    %c0_3 = arith.constant 0 : index
    %2 = vector.load %arg3[%c0_2, %c0_3] : memref<32x96xbf16, #tpu.memory_space<vmem>>, vector<32x96xbf16>
    %cst = arith.constant dense<0.000000e+00> : vector<8x96xf32>
    %3 = tpu.matmul %1, %2, %cst {dimension_numbers = #tpu.dot_dimension_numbers<[1], [0], [0], [1], [0, 0, 1, 1], [], []>} : vector<8x32xbf16>, vector<32x96xbf16>, vector<8x96xf32> -> vector<8x96xf32>
    %c0_4 = arith.constant 0 : index
    %c0_5 = arith.constant 0 : index
    %4 = vector.load %arg4[%c0_4, %c0_5] : memref<1x96xf32, #tpu.memory_space<vmem>>, vector<1x96xf32>
    %5 = vector.broadcast %4 : vector<1x96xf32> to vector<8x96xf32>
    %6 = arith.addf %3, %5 : vector<8x96xf32>
    %c0_6 = arith.constant 0 : index
    %c0_7 = arith.constant 0 : index
    %c0_8 = arith.constant 0 : index
    %7 = vector.load %arg2[%c0_6, %c0_7, %c0_8] : memref<1x1x8xf32, #tpu.memory_space<vmem>>, vector<1x1x8xf32>
    %8 = vector.shape_cast %7 : vector<1x1x8xf32> to vector<1x8xf32>
    %cst_9 = arith.constant 1.000000e+00 : f32
    %9 = vector.broadcast %cst_9 : f32 to vector<1x8xf32>
    %10 = arith.subf %9, %8 : vector<1x8xf32>
    %cst_10 = arith.constant -1.000000e+09 : f32
    %11 = vector.broadcast %cst_10 : f32 to vector<1x8xf32>
    %12 = arith.mulf %10, %11 : vector<1x8xf32>
    %cst_11 = arith.constant 0.000000e+00 : f32
    %13 = vector.broadcast %cst_11 : f32 to vector<8x32xf32>
    %14 = vector.extract_strided_slice %6 {offsets = [0, 0], sizes = [8, 8], strides = [1, 1]} : vector<8x96xf32> to vector<8x8xf32>
    %15 = arith.truncf %14 : vector<8x8xf32> to vector<8x8xbf16>
    %16 = vector.extract_strided_slice %6 {offsets = [0, 32], sizes = [8, 8], strides = [1, 1]} : vector<8x96xf32> to vector<8x8xf32>
    %17 = arith.truncf %16 : vector<8x8xf32> to vector<8x8xbf16>
    %18 = vector.extract_strided_slice %6 {offsets = [0, 64], sizes = [8, 8], strides = [1, 1]} : vector<8x96xf32> to vector<8x8xf32>
    %19 = arith.truncf %18 : vector<8x8xf32> to vector<8x8xbf16>
    %cst_12 = arith.constant dense<0.000000e+00> : vector<8x8xf32>
    %20 = tpu.matmul %15, %17, %cst_12 {dimension_numbers = #tpu.dot_dimension_numbers<[1], [1], [0], [0], [0, 0, 1, 0], [], []>} : vector<8x8xbf16>, vector<8x8xbf16>, vector<8x8xf32> -> vector<8x8xf32>
    %cst_13 = arith.constant 0.353553385 : f32
    %21 = vector.broadcast %cst_13 : f32 to vector<8x8xf32>
    %22 = arith.mulf %20, %21 : vector<8x8xf32>
    %23 = vector.broadcast %12 : vector<1x8xf32> to vector<8x8xf32>
    %24 = arith.addf %22, %23 : vector<8x8xf32>
    %cst_14 = arith.constant dense<0xFF800000> : vector<8xf32>
    %25 = vector.multi_reduction <maximumf>, %24, %cst_14 [1] : vector<8x8xf32> to vector<8xf32>
    %26 = vector.shape_cast %25 : vector<8xf32> to vector<8x1xf32>
    %27 = vector.broadcast %26 : vector<8x1xf32> to vector<8x8xf32>
    %28 = arith.subf %24, %27 : vector<8x8xf32>
    %29 = math.exp %28 : vector<8x8xf32>
    %cst_15 = arith.constant dense<0.000000e+00> : vector<8xf32>
    %30 = vector.multi_reduction <add>, %29, %cst_15 [1] : vector<8x8xf32> to vector<8xf32>
    %31 = vector.shape_cast %30 : vector<8xf32> to vector<8x1xf32>
    %32 = tpu.reciprocal %31 {approx = true} : vector<8x1xf32> -> vector<8x1xf32>
    %33 = vector.broadcast %32 : vector<8x1xf32> to vector<8x8xf32>
    %34 = arith.mulf %29, %33 : vector<8x8xf32>
    %35 = arith.truncf %34 : vector<8x8xf32> to vector<8x8xbf16>
    %cst_16 = arith.constant dense<0.000000e+00> : vector<8x8xf32>
    %36 = tpu.matmul %35, %19, %cst_16 {dimension_numbers = #tpu.dot_dimension_numbers<[1], [0], [0], [1], [0, 0, 1, 1], [], []>} : vector<8x8xbf16>, vector<8x8xbf16>, vector<8x8xf32> -> vector<8x8xf32>
    %c0_17 = arith.constant 0 : index
    %c0_18 = arith.constant 0 : index
    %37 = vector.load %arg5[%c0_17, %c0_18] : memref<32x32xbf16, #tpu.memory_space<vmem>>, vector<8x32xbf16>
    %38 = arith.truncf %36 : vector<8x8xf32> to vector<8x8xbf16>
    %cst_19 = arith.constant dense<0.000000e+00> : vector<8x32xf32>
    %39 = tpu.matmul %38, %37, %cst_19 {dimension_numbers = #tpu.dot_dimension_numbers<[1], [0], [0], [1], [0, 0, 1, 1], [], []>} : vector<8x8xbf16>, vector<8x32xbf16>, vector<8x32xf32> -> vector<8x32xf32>
    %40 = arith.addf %13, %39 : vector<8x32xf32>
    %41 = vector.extract_strided_slice %6 {offsets = [0, 8], sizes = [8, 8], strides = [1, 1]} : vector<8x96xf32> to vector<8x8xf32>
    %42 = arith.truncf %41 : vector<8x8xf32> to vector<8x8xbf16>
    %43 = vector.extract_strided_slice %6 {offsets = [0, 40], sizes = [8, 8], strides = [1, 1]} : vector<8x96xf32> to vector<8x8xf32>
    %44 = arith.truncf %43 : vector<8x8xf32> to vector<8x8xbf16>
    %45 = vector.extract_strided_slice %6 {offsets = [0, 72], sizes = [8, 8], strides = [1, 1]} : vector<8x96xf32> to vector<8x8xf32>
    %46 = arith.truncf %45 : vector<8x8xf32> to vector<8x8xbf16>
    %cst_20 = arith.constant dense<0.000000e+00> : vector<8x8xf32>
    %47 = tpu.matmul %42, %44, %cst_20 {dimension_numbers = #tpu.dot_dimension_numbers<[1], [1], [0], [0], [0, 0, 1, 0], [], []>} : vector<8x8xbf16>, vector<8x8xbf16>, vector<8x8xf32> -> vector<8x8xf32>
    %cst_21 = arith.constant 0.353553385 : f32
    %48 = vector.broadcast %cst_21 : f32 to vector<8x8xf32>
    %49 = arith.mulf %47, %48 : vector<8x8xf32>
    %50 = vector.broadcast %12 : vector<1x8xf32> to vector<8x8xf32>
    %51 = arith.addf %49, %50 : vector<8x8xf32>
    %cst_22 = arith.constant dense<0xFF800000> : vector<8xf32>
    %52 = vector.multi_reduction <maximumf>, %51, %cst_22 [1] : vector<8x8xf32> to vector<8xf32>
    %53 = vector.shape_cast %52 : vector<8xf32> to vector<8x1xf32>
    %54 = vector.broadcast %53 : vector<8x1xf32> to vector<8x8xf32>
    %55 = arith.subf %51, %54 : vector<8x8xf32>
    %56 = math.exp %55 : vector<8x8xf32>
    %cst_23 = arith.constant dense<0.000000e+00> : vector<8xf32>
    %57 = vector.multi_reduction <add>, %56, %cst_23 [1] : vector<8x8xf32> to vector<8xf32>
    %58 = vector.shape_cast %57 : vector<8xf32> to vector<8x1xf32>
    %59 = tpu.reciprocal %58 {approx = true} : vector<8x1xf32> -> vector<8x1xf32>
    %60 = vector.broadcast %59 : vector<8x1xf32> to vector<8x8xf32>
    %61 = arith.mulf %56, %60 : vector<8x8xf32>
    %62 = arith.truncf %61 : vector<8x8xf32> to vector<8x8xbf16>
    %cst_24 = arith.constant dense<0.000000e+00> : vector<8x8xf32>
    %63 = tpu.matmul %62, %46, %cst_24 {dimension_numbers = #tpu.dot_dimension_numbers<[1], [0], [0], [1], [0, 0, 1, 1], [], []>} : vector<8x8xbf16>, vector<8x8xbf16>, vector<8x8xf32> -> vector<8x8xf32>
    %c8 = arith.constant 8 : index
    %c0_25 = arith.constant 0 : index
    %64 = vector.load %arg5[%c8, %c0_25] : memref<32x32xbf16, #tpu.memory_space<vmem>>, vector<8x32xbf16>
    %65 = arith.truncf %63 : vector<8x8xf32> to vector<8x8xbf16>
    %cst_26 = arith.constant dense<0.000000e+00> : vector<8x32xf32>
    %66 = tpu.matmul %65, %64, %cst_26 {dimension_numbers = #tpu.dot_dimension_numbers<[1], [0], [0], [1], [0, 0, 1, 1], [], []>} : vector<8x8xbf16>, vector<8x32xbf16>, vector<8x32xf32> -> vector<8x32xf32>
    %67 = arith.addf %40, %66 : vector<8x32xf32>
    %68 = vector.extract_strided_slice %6 {offsets = [0, 16], sizes = [8, 8], strides = [1, 1]} : vector<8x96xf32> to vector<8x8xf32>
    %69 = arith.truncf %68 : vector<8x8xf32> to vector<8x8xbf16>
    %70 = vector.extract_strided_slice %6 {offsets = [0, 48], sizes = [8, 8], strides = [1, 1]} : vector<8x96xf32> to vector<8x8xf32>
    %71 = arith.truncf %70 : vector<8x8xf32> to vector<8x8xbf16>
    %72 = vector.extract_strided_slice %6 {offsets = [0, 80], sizes = [8, 8], strides = [1, 1]} : vector<8x96xf32> to vector<8x8xf32>
    %73 = arith.truncf %72 : vector<8x8xf32> to vector<8x8xbf16>
    %cst_27 = arith.constant dense<0.000000e+00> : vector<8x8xf32>
    %74 = tpu.matmul %69, %71, %cst_27 {dimension_numbers = #tpu.dot_dimension_numbers<[1], [1], [0], [0], [0, 0, 1, 0], [], []>} : vector<8x8xbf16>, vector<8x8xbf16>, vector<8x8xf32> -> vector<8x8xf32>
    %cst_28 = arith.constant 0.353553385 : f32
    %75 = vector.broadcast %cst_28 : f32 to vector<8x8xf32>
    %76 = arith.mulf %74, %75 : vector<8x8xf32>
    %77 = vector.broadcast %12 : vector<1x8xf32> to vector<8x8xf32>
    %78 = arith.addf %76, %77 : vector<8x8xf32>
    %cst_29 = arith.constant dense<0xFF800000> : vector<8xf32>
    %79 = vector.multi_reduction <maximumf>, %78, %cst_29 [1] : vector<8x8xf32> to vector<8xf32>
    %80 = vector.shape_cast %79 : vector<8xf32> to vector<8x1xf32>
    %81 = vector.broadcast %80 : vector<8x1xf32> to vector<8x8xf32>
    %82 = arith.subf %78, %81 : vector<8x8xf32>
    %83 = math.exp %82 : vector<8x8xf32>
    %cst_30 = arith.constant dense<0.000000e+00> : vector<8xf32>
    %84 = vector.multi_reduction <add>, %83, %cst_30 [1] : vector<8x8xf32> to vector<8xf32>
    %85 = vector.shape_cast %84 : vector<8xf32> to vector<8x1xf32>
    %86 = tpu.reciprocal %85 {approx = true} : vector<8x1xf32> -> vector<8x1xf32>
    %87 = vector.broadcast %86 : vector<8x1xf32> to vector<8x8xf32>
    %88 = arith.mulf %83, %87 : vector<8x8xf32>
    %89 = arith.truncf %88 : vector<8x8xf32> to vector<8x8xbf16>
    %cst_31 = arith.constant dense<0.000000e+00> : vector<8x8xf32>
    %90 = tpu.matmul %89, %73, %cst_31 {dimension_numbers = #tpu.dot_dimension_numbers<[1], [0], [0], [1], [0, 0, 1, 1], [], []>} : vector<8x8xbf16>, vector<8x8xbf16>, vector<8x8xf32> -> vector<8x8xf32>
    %c16 = arith.constant 16 : index
    %c0_32 = arith.constant 0 : index
    %91 = vector.load %arg5[%c16, %c0_32] : memref<32x32xbf16, #tpu.memory_space<vmem>>, vector<8x32xbf16>
    %92 = arith.truncf %90 : vector<8x8xf32> to vector<8x8xbf16>
    %cst_33 = arith.constant dense<0.000000e+00> : vector<8x32xf32>
    %93 = tpu.matmul %92, %91, %cst_33 {dimension_numbers = #tpu.dot_dimension_numbers<[1], [0], [0], [1], [0, 0, 1, 1], [], []>} : vector<8x8xbf16>, vector<8x32xbf16>, vector<8x32xf32> -> vector<8x32xf32>
    %94 = arith.addf %67, %93 : vector<8x32xf32>
    %95 = vector.extract_strided_slice %6 {offsets = [0, 24], sizes = [8, 8], strides = [1, 1]} : vector<8x96xf32> to vector<8x8xf32>
    %96 = arith.truncf %95 : vector<8x8xf32> to vector<8x8xbf16>
    %97 = vector.extract_strided_slice %6 {offsets = [0, 56], sizes = [8, 8], strides = [1, 1]} : vector<8x96xf32> to vector<8x8xf32>
    %98 = arith.truncf %97 : vector<8x8xf32> to vector<8x8xbf16>
    %99 = vector.extract_strided_slice %6 {offsets = [0, 88], sizes = [8, 8], strides = [1, 1]} : vector<8x96xf32> to vector<8x8xf32>
    %100 = arith.truncf %99 : vector<8x8xf32> to vector<8x8xbf16>
    %cst_34 = arith.constant dense<0.000000e+00> : vector<8x8xf32>
    %101 = tpu.matmul %96, %98, %cst_34 {dimension_numbers = #tpu.dot_dimension_numbers<[1], [1], [0], [0], [0, 0, 1, 0], [], []>} : vector<8x8xbf16>, vector<8x8xbf16>, vector<8x8xf32> -> vector<8x8xf32>
    %cst_35 = arith.constant 0.353553385 : f32
    %102 = vector.broadcast %cst_35 : f32 to vector<8x8xf32>
    %103 = arith.mulf %101, %102 : vector<8x8xf32>
    %104 = vector.broadcast %12 : vector<1x8xf32> to vector<8x8xf32>
    %105 = arith.addf %103, %104 : vector<8x8xf32>
    %cst_36 = arith.constant dense<0xFF800000> : vector<8xf32>
    %106 = vector.multi_reduction <maximumf>, %105, %cst_36 [1] : vector<8x8xf32> to vector<8xf32>
    %107 = vector.shape_cast %106 : vector<8xf32> to vector<8x1xf32>
    %108 = vector.broadcast %107 : vector<8x1xf32> to vector<8x8xf32>
    %109 = arith.subf %105, %108 : vector<8x8xf32>
    %110 = math.exp %109 : vector<8x8xf32>
    %cst_37 = arith.constant dense<0.000000e+00> : vector<8xf32>
    %111 = vector.multi_reduction <add>, %110, %cst_37 [1] : vector<8x8xf32> to vector<8xf32>
    %112 = vector.shape_cast %111 : vector<8xf32> to vector<8x1xf32>
    %113 = tpu.reciprocal %112 {approx = true} : vector<8x1xf32> -> vector<8x1xf32>
    %114 = vector.broadcast %113 : vector<8x1xf32> to vector<8x8xf32>
    %115 = arith.mulf %110, %114 : vector<8x8xf32>
    %116 = arith.truncf %115 : vector<8x8xf32> to vector<8x8xbf16>
    %cst_38 = arith.constant dense<0.000000e+00> : vector<8x8xf32>
    %117 = tpu.matmul %116, %100, %cst_38 {dimension_numbers = #tpu.dot_dimension_numbers<[1], [0], [0], [1], [0, 0, 1, 1], [], []>} : vector<8x8xbf16>, vector<8x8xbf16>, vector<8x8xf32> -> vector<8x8xf32>
    %c24 = arith.constant 24 : index
    %c0_39 = arith.constant 0 : index
    %118 = vector.load %arg5[%c24, %c0_39] : memref<32x32xbf16, #tpu.memory_space<vmem>>, vector<8x32xbf16>
    %119 = arith.truncf %117 : vector<8x8xf32> to vector<8x8xbf16>
    %cst_40 = arith.constant dense<0.000000e+00> : vector<8x32xf32>
    %120 = tpu.matmul %119, %118, %cst_40 {dimension_numbers = #tpu.dot_dimension_numbers<[1], [0], [0], [1], [0, 0, 1, 1], [], []>} : vector<8x8xbf16>, vector<8x32xbf16>, vector<8x32xf32> -> vector<8x32xf32>
    %121 = arith.addf %94, %120 : vector<8x32xf32>
    %c0_41 = arith.constant 0 : index
    %c0_42 = arith.constant 0 : index
    %122 = vector.load %arg6[%c0_41, %c0_42] : memref<1x32xf32, #tpu.memory_space<vmem>>, vector<1x32xf32>
    %123 = vector.broadcast %122 : vector<1x32xf32> to vector<8x32xf32>
    %124 = arith.addf %121, %123 : vector<8x32xf32>
    %125 = arith.extf %1 : vector<8x32xbf16> to vector<8x32xf32>
    %126 = arith.addf %124, %125 : vector<8x32xf32>
    %cst_43 = arith.constant dense<0.000000e+00> : vector<8xf32>
    %127 = vector.multi_reduction <add>, %126, %cst_43 [1] : vector<8x32xf32> to vector<8xf32>
    %128 = vector.shape_cast %127 : vector<8xf32> to vector<8x1xf32>
    %cst_44 = arith.constant 3.200000e+01 : f32
    %129 = vector.broadcast %cst_44 : f32 to vector<8x1xf32>
    %130 = arith.divf %128, %129 : vector<8x1xf32>
    %131 = vector.broadcast %130 : vector<8x1xf32> to vector<8x32xf32>
    %132 = arith.subf %126, %131 : vector<8x32xf32>
    %133 = arith.mulf %132, %132 : vector<8x32xf32>
    %cst_45 = arith.constant dense<0.000000e+00> : vector<8xf32>
    %134 = vector.multi_reduction <add>, %133, %cst_45 [1] : vector<8x32xf32> to vector<8xf32>
    %135 = vector.shape_cast %134 : vector<8xf32> to vector<8x1xf32>
    %cst_46 = arith.constant 3.200000e+01 : f32
    %136 = vector.broadcast %cst_46 : f32 to vector<8x1xf32>
    %137 = arith.divf %135, %136 : vector<8x1xf32>
    %138 = vector.broadcast %130 : vector<8x1xf32> to vector<8x32xf32>
    %139 = arith.subf %126, %138 : vector<8x32xf32>
    %cst_47 = arith.constant 9.99999996E-13 : f32
    %140 = vector.broadcast %cst_47 : f32 to vector<8x1xf32>
    %141 = arith.addf %137, %140 : vector<8x1xf32>
    %142 = math.rsqrt %141 : vector<8x1xf32>
    %143 = vector.broadcast %142 : vector<8x1xf32> to vector<8x32xf32>
    %144 = arith.mulf %139, %143 : vector<8x32xf32>
    %c0_48 = arith.constant 0 : index
    %c0_49 = arith.constant 0 : index
    %145 = vector.load %arg7[%c0_48, %c0_49] : memref<1x32xf32, #tpu.memory_space<vmem>>, vector<1x32xf32>
    %146 = vector.broadcast %145 : vector<1x32xf32> to vector<8x32xf32>
    %147 = arith.mulf %144, %146 : vector<8x32xf32>
    %c0_50 = arith.constant 0 : index
    %c0_51 = arith.constant 0 : index
    %148 = vector.load %arg8[%c0_50, %c0_51] : memref<1x32xf32, #tpu.memory_space<vmem>>, vector<1x32xf32>
    %149 = vector.broadcast %148 : vector<1x32xf32> to vector<8x32xf32>
    %150 = arith.addf %147, %149 : vector<8x32xf32>
    %151 = arith.truncf %150 : vector<8x32xf32> to vector<8x32xbf16>
    %c0_52 = arith.constant 0 : index
    %c0_53 = arith.constant 0 : index
    %c0_54 = arith.constant 0 : index
    %152 = vector.load %arg9[%c0_52, %c0_53, %c0_54] : memref<1x8x32xbf16, #tpu.memory_space<vmem>>, vector<1x8x32xbf16>
    %153 = vector.shape_cast %152 : vector<1x8x32xbf16> to vector<8x32xbf16>
    %154 = vector.shape_cast %151 : vector<8x32xbf16> to vector<1x8x32xbf16>
    tpu.vector_store %arg9[%c0_52, %c0_53, %c0_54], %154 {strides = array<i32>} : memref<1x8x32xbf16, #tpu.memory_space<vmem>>, vector<1x8x32xbf16>,
    return
  }
  func.func @transform_0(%arg0: i32) -> (i32, i32, i32) {
    %c0_i32 = arith.constant 0 : i32
    %c0_i32_0 = arith.constant 0 : i32
    %c0_i32_1 = arith.constant 0 : i32
    return %arg0, %c0_i32, %c0_i32_0 : i32, i32, i32
  }
  func.func @transform_1(%arg0: i32) -> (i32, i32, i32) {
    %c0_i32 = arith.constant 0 : i32
    %c0_i32_0 = arith.constant 0 : i32
    %c0_i32_1 = arith.constant 0 : i32
    return %arg0, %c0_i32, %c0_i32_0 : i32, i32, i32
  }
  func.func @transform_2(%arg0: i32) -> (i32, i32) {
    %c0_i32 = arith.constant 0 : i32
    %c0_i32_0 = arith.constant 0 : i32
    %c0_i32_1 = arith.constant 0 : i32
    return %c0_i32, %c0_i32_0 : i32, i32
  }
  func.func @transform_3(%arg0: i32) -> (i32, i32) {
    %c0_i32 = arith.constant 0 : i32
    %c0_i32_0 = arith.constant 0 : i32
    %c0_i32_1 = arith.constant 0 : i32
    return %c0_i32, %c0_i32_0 : i32, i32
  }
  func.func @transform_4(%arg0: i32) -> (i32, i32) {
    %c0_i32 = arith.constant 0 : i32
    %c0_i32_0 = arith.constant 0 : i32
    %c0_i32_1 = arith.constant 0 : i32
    return %c0_i32, %c0_i32_0 : i32, i32
  }
  func.func @transform_5(%arg0: i32) -> (i32, i32) {
    %c0_i32 = arith.constant 0 : i32
    %c0_i32_0 = arith.constant 0 : i32
    %c0_i32_1 = arith.constant 0 : i32
    return %c0_i32, %c0_i32_0 : i32, i32
  }
  func.func @transform_6(%arg0: i32) -> (i32, i32) {
    %c0_i32 = arith.constant 0 : i32
    %c0_i32_0 = arith.constant 0 : i32
    %c0_i32_1 = arith.constant 0 : i32
    return %c0_i32, %c0_i32_0 : i32, i32
  }
  func.func @transform_7(%arg0: i32) -> (i32, i32) {
    %c0_i32 = arith.constant 0 : i32
    %c0_i32_0 = arith.constant 0 : i32
    %c0_i32_1 = arith.constant 0 : i32
    return %c0_i32, %c0_i32_0 : i32, i32
  }
  func.func @transform_8(%arg0: i32) -> (i32, i32, i32) {
    %c0_i32 = arith.constant 0 : i32
    %c0_i32_0 = arith.constant 0 : i32
    %c0_i32_1 = arith.constant 0 : i32
    return %arg0, %c0_i32, %c0_i32_0 : i32, i32, i32
  }
}

</mosaic_0001>

<llo_original>
// kernel: text_only_forward.11
$region0: #{text_only_forward.11}
  #allocation0 [shape = 'u32[]', space=smem, size = 0x4, offset = 0x4, fixed_abs, tag = 'smem constant byte address 0x4 - core index']
  #allocation1 [shape = 'u32[144,128]{1,0:T(1,128)}', space=vmem, size = 0x12000, scoped, tag = 'internal scratch']
  %s0 = inlined_call_operand.vmem [shape: bf16[2,32], index: 0, kind: input, shape index: {}]
  %s1 = inlined_call_operand.vmem [shape: f32[32,2], index: 1, kind: input, shape index: {}]
  %s2 = inlined_call_operand.vmem [shape: f32[1,2], index: 2, kind: input, shape index: {}]
  %s3 = inlined_call_operand.hbm [shape: f32[2,2], index: 3, kind: output, shape index: {}]
  %s4 = sld [smem:[#allocation0]]
  $region22: #{text_only_forward.11} parent=0
    _
  %s6 = ssub.s32 1, %s4
  %s7 = scalar_select 0, %s6, %s4
  $region1: #{text_only_forward.11} parent=0
    #allocation2 [shape = 'u8[1024]{0}', space=vmem, size = 0x400, scoped, tag = 'output window, operand 0, single buffered']
    #allocation3 [shape = 's32[1]{0}', space=sflag, size = 0x4, scoped, tag = 'scoped memory for text_only_forward.11']
    %8 = vsyncpa [#allocation3], 0
    // Predicated region
    $region2: #{text_only_forward.11} parent=1 // pred_check
      _
    $region3: #{text_only_forward.11} parent=1 // pred_check_branch
      %10 = sbr.rel (0) target = $region5
    $region4: #{text_only_forward.11} parent=1 // pred_region
      _
    $region5: #{text_only_forward.11} parent=1 // pred_fallthru
      _
    // Predicated region
    $region6: #{text_only_forward.11} parent=1 // pred_check
      _
    $region7: #{text_only_forward.11} parent=1 // pred_check_branch
      %12 = sbr.rel (0) target = $region9
    $region8: #{text_only_forward.11} parent=1 // pred_region
      _
    $region9: #{text_only_forward.11} parent=1 // pred_fallthru
      _
    // Predicated region
    $region10: #{text_only_forward.11} parent=1 // pred_check
      _
    $region11: #{text_only_forward.11} parent=1 // pred_check_branch
      %14 = sbr.rel (0) target = $region13
    $region12: #{text_only_forward.11} parent=1 // pred_region
      _
    $region13: #{text_only_forward.11} parent=1 // pred_fallthru
      _
    %v15 = vld [vmem:[%s0] sm:$0x1]
    %v16 = vunpack.c.l.bf16 %v15
    %v17 = vld [vmem:[%s1] sm:$0xff]
    %v18 = vld [vmem:[%s1 + $0x8] sm:$0xff]
    %v19 = vld [vmem:[%s1 + $0x10] sm:$0xff]
    %v20 = vld [vmem:[%s1 + $0x18] sm:$0xff]
    %v21 = vld [vmem:[%s2] sm:$0x1]
    %v23 = vlaneseq
    %v24 = vshrl.u32 %v23, 7
    %v25 = vsub.s32 0, %v24
    %v26 = vrot.slane %v21, %v25
    %vm28 = vcmask 261120
    %v30 = vsel %vm28, %v16, 0
    %32 = vmatprep.subr.mxu0 0.0
    %33 = vmatpush1.msra.mxu0 0.0
    %34 = vmatprep.subr.mxu0 0.0
    %35 = vmatpush1.msra.mxu0 0.0
    %36 = vmatprep.subr.mxu0 0.0
    %37 = vmatpush1.msra.mxu0 0.0
    %38 = vmatprep.subr.mxu0 0.0
    %39 = vmatpush1.msra.mxu0 0.0
    %40 = vmatprep.subr.mxu0 0.0
    %41 = vmatpush1.msra.mxu0 0.0
    %42 = vmatprep.subr.mxu0 0.0
    %43 = vmatpush1.msra.mxu0 0.0
    %44 = vmatprep.subr.mxu0 0.0
    %45 = vmatpush1.msra.mxu0 0.0
    %46 = vmatprep.subr.mxu0 0.0
    %47 = vmatpush1.msra.mxu0 0.0
    %48 = vmatprep.subr.mxu0 0.0
    %49 = vmatpush1.msra.mxu0 0.0
    %50 = vmatprep.subr.mxu0 0.0
    %51 = vmatpush1.msra.mxu0 0.0
    %52 = vmatprep.subr.mxu0 0.0
    %53 = vmatpush1.msra.mxu0 0.0
    %54 = vmatprep.subr.mxu0 0.0
    %55 = vmatpush1.msra.mxu0 0.0
    %56 = vmatprep.subr.mxu0 0.0
    %57 = vmatpush1.msra.mxu0 %v20
    %58 = vmatprep.subr.mxu0 0.0
    %59 = vmatpush1.msra.mxu0 %v19
    %60 = vmatprep.subr.mxu0 0.0
    %61 = vmatpush1.msra.mxu0 %v18
    %62 = vmatprep.subr.mxu0 0.0
    %63 = vmatpush1.msra.mxu0 %v17
    %64 = vmatprep.subr.mxu0 0.0
    %65 = vmatpush2.msra.mxu0 0.0
    %66 = vmatprep.subr.mxu0 0.0
    %67 = vmatpush2.msra.mxu0 0.0
    %68 = vmatprep.subr.mxu0 0.0
    %69 = vmatpush2.msra.mxu0 0.0
    %70 = vmatprep.subr.mxu0 0.0
    %71 = vmatpush2.msra.mxu0 0.0
    %72 = vmatprep.subr.mxu0 0.0
    %73 = vmatpush2.msra.mxu0 0.0
    %74 = vmatprep.subr.mxu0 0.0
    %75 = vmatpush2.msra.mxu0 0.0
    %76 = vmatprep.subr.mxu0 0.0
    %77 = vmatpush2.msra.mxu0 0.0
    %78 = vmatprep.subr.mxu0 0.0
    %79 = vmatpush2.msra.mxu0 0.0
    %80 = vmatprep.subr.mxu0 0.0
    %81 = vmatpush2.msra.mxu0 0.0
    %82 = vmatprep.subr.mxu0 0.0
    %83 = vmatpush2.msra.mxu0 0.0
    %84 = vmatprep.subr.mxu0 0.0
    %85 = vmatpush2.msra.mxu0 0.0
    %86 = vmatprep.subr.mxu0 0.0
    %87 = vmatpush2.msra.mxu0 0.0
    %88 = vmatprep.subr.mxu0 0.0
    %89 = vmatpush2.msra.mxu0 0.0
    %90 = vmatprep.subr.mxu0 0.0
    %91 = vmatpush2.msra.mxu0 0.0
    %92 = vmatprep.subr.mxu0 0.0
    %93 = vmatpush2.msra.mxu0 0.0
    %94 = vmatprep.subr.mxu0 0.0
    %95 = vmatpush2.msra.mxu0 0.0
    %96 = vmatprep.mubr.f32.mxu0 0.0
    %97 = vmatmul.mubr.f32.gmra.mxu0 %v30
    %v98 = vpop.f32.mrf.mxu0
    %v99 = vadd.f32 %v26, %v98
    %v100 = vpop.f32.mrf.mxu0
    %101 = vdwg.mxu0
    %vm102 = vcmask 9216
    %103 = vst.msk [vmem:[#allocation2] sm:$0x3] %vm102, %v99
    // Predicated region
    $region14: #{text_only_forward.11} parent=1 // pred_check
      _
    $region15: #{text_only_forward.11} parent=1 // pred_check_branch
      %105 = sbr.rel (0) target = $region17
    $region16: #{text_only_forward.11} parent=1 // pred_region
      %s107 = ssub.s32 32, 32
      %108 = vsyncadd [#allocation3], %s107
      %s110 = sshll.u32 [#allocation2], 4
      %s111 = int_to_ptr.vmem [resolvable:$true] %s110
      %113 = dma.vmem_to_hbm [thread:$0]  %s111, 32, %s3, [#allocation3]
    $region17: #{text_only_forward.11} parent=1 // pred_fallthru
      _
    // Predicated region
    $region18: #{text_only_forward.11} parent=1 // pred_check
      _
    $region19: #{text_only_forward.11} parent=1 // pred_check_branch
      %115 = sbr.rel (0) target = $region21
    $region20: #{text_only_forward.11} parent=1 // pred_region
      %116 = dma.done [#allocation3], 32
    $region21: #{text_only_forward.11} parent=1 // pred_fallthru
      _
    %117 = vsyncpa [#allocation3], 1

// kernel: text_only_forward.8
$region0: #{text_only_forward.8}
  #allocation0 [shape = 'u32[]', space=smem, size = 0x4, offset = 0x4, fixed_abs, tag = 'smem constant byte address 0x4 - core index']
  #allocation1 [shape = 'u32[144,128]{1,0:T(1,128)}', space=vmem, size = 0x12000, scoped, tag = 'internal scratch']
  %s0 = inlined_call_operand.vmem [shape: bf16[2,8,32], index: 0, kind: input, shape index: {}]
  %s1 = inlined_call_operand.vmem [shape: bf16[32,64], index: 1, kind: input, shape index: {}]
  %s2 = inlined_call_operand.vmem [shape: f32[1,64], index: 2, kind: input, shape index: {}]
  %s3 = inlined_call_operand.vmem [shape: bf16[64,32], index: 3, kind: input, shape index: {}]
  %s4 = inlined_call_operand.vmem [shape: f32[1,32], index: 4, kind: input, shape index: {}]
  %s5 = inlined_call_operand.vmem [shape: f32[1,32], index: 5, kind: input, shape index: {}]
  %s6 = inlined_call_operand.vmem [shape: f32[1,32], index: 6, kind: input, shape index: {}]
  %s7 = inlined_call_operand.vmem [shape: bf16[2,8,32], index: 7, kind: output, shape index: {}]
  %s8 = sld [smem:[#allocation0]]
  $region61: #{text_only_forward.8} parent=0
    _
  %s10 = ssub.s32 1, %s8
  %s11 = scalar_select 0, %s10, %s8
  loop: start=0, step=1, limit=4
  $region2: #{text_only_forward.8} parent=0 // loop_pre_header
    _
  $region3: #{text_only_forward.8} parent=0 // loop_header
    %s13 = sphi 0, %s17
    %p14 = scmp.ge.s32.totalorder %s13, 4
    %s23 = sphi 0, %s25
    %s26 = sphi 0, %s23
    %s27 = sphi 0, %s26
    %s43 = sphi 0, %s27
    %s47 = sphi 0, %s47
    %s49 = sphi 0, %s47
    %s50 = sphi 0, %s49
    %s64 = sphi 0, %s50
    %s68 = sphi 0, %s68
    %s70 = sphi 0, %s68
    %s71 = sphi 0, %s70
    %s85 = sphi 0, %s71
    %s89 = sphi 0, %s89
    %s91 = sphi 0, %s89
    %s92 = sphi 0, %s91
    %s106 = sphi 0, %s92
    %s110 = sphi 0, %s110
    %s112 = sphi 0, %s110
    %s113 = sphi 0, %s112
    %s127 = sphi 0, %s113
    %s131 = sphi 0, %s131
    %s133 = sphi 0, %s131
    %s134 = sphi 0, %s133
    %s148 = sphi 0, %s134
    %s152 = sphi 0, %s152
    %s154 = sphi 0, %s152
    %s155 = sphi 0, %s154
    %s169 = sphi 0, %s155
    %s175 = sphi 0, %s177
    %s178 = sphi 0, %s175
    %s179 = sphi 0, %s178
    %s195 = sphi 0, %s179
  $region4: #{text_only_forward.8} parent=0 // loop_header_branch
    %16 = sbr.rel (%p14) target = $region8
  $region5: #{text_only_forward.8} parent=0 // loop_body
    %s18 = ssub.s32 %s13, 1
    %s19 = ssub.s32 %s13, 2
    %s20 = sadd.s32 %s13, 1
    %s21 = ssub.s32 %s13, %s20
    %p22 = scmp.eq.s32.totalorder %s21, 0
    %s24 = sadd.s32 %s23, 1
    %s25 = scalar_select %p22, %s23, %s24
    %p28 = pneg %p22
    %p29 = scmp.eq.s32.totalorder %s13, 1
    %p30 = por %p28, %p29
    %p31 = scmp.ne.s32.totalorder %s23, %s26
    %p32 = scmp.eq.s32.totalorder %s13, 0
    %p33 = por %p31, %p32
    %p34 = scmp.ne.s32.totalorder %s23, %s26
    %p35 = scmp.eq.s32.totalorder %s18, 1
    %p36 = por %p34, %p35
    %p37 = scmp.ne.s32.totalorder %s26, %s27
    %p38 = scmp.eq.s32.totalorder %s18, 0
    %p39 = por %p37, %p38
    %p40 = scmp.ne.s32.totalorder %s26, %s27
    %p41 = scmp.eq.s32.totalorder %s19, 1
    %p42 = por %p40, %p41
    %p44 = scmp.ne.s32.totalorder %s27, %s43
    %p45 = scmp.eq.s32.totalorder %s19, 0
    %p46 = por %p44, %p45
    %s48 = sadd.s32 %s47, 1
    %p51 = scmp.eq.s32.totalorder %s13, 1
    %p52 = scmp.ne.s32.totalorder %s47, %s49
    %p53 = scmp.eq.s32.totalorder %s13, 0
    %p54 = por %p52, %p53
    %p55 = scmp.ne.s32.totalorder %s47, %s49
    %p56 = scmp.eq.s32.totalorder %s18, 1
    %p57 = por %p55, %p56
    %p58 = scmp.ne.s32.totalorder %s49, %s50
    %p59 = scmp.eq.s32.totalorder %s18, 0
    %p60 = por %p58, %p59
    %p61 = scmp.ne.s32.totalorder %s49, %s50
    %p62 = scmp.eq.s32.totalorder %s19, 1
    %p63 = por %p61, %p62
    %p65 = scmp.ne.s32.totalorder %s50, %s64
    %p66 = scmp.eq.s32.totalorder %s19, 0
    %p67 = por %p65, %p66
    %s69 = sadd.s32 %s68, 1
    %p72 = scmp.eq.s32.totalorder %s13, 1
    %p73 = scmp.ne.s32.totalorder %s68, %s70
    %p74 = scmp.eq.s32.totalorder %s13, 0
    %p75 = por %p73, %p74
    %p76 = scmp.ne.s32.totalorder %s68, %s70
    %p77 = scmp.eq.s32.totalorder %s18, 1
    %p78 = por %p76, %p77
    %p79 = scmp.ne.s32.totalorder %s70, %s71
    %p80 = scmp.eq.s32.totalorder %s18, 0
    %p81 = por %p79, %p80
    %p82 = scmp.ne.s32.totalorder %s70, %s71
    %p83 = scmp.eq.s32.totalorder %s19, 1
    %p84 = por %p82, %p83
    %p86 = scmp.ne.s32.totalorder %s71, %s85
    %p87 = scmp.eq.s32.totalorder %s19, 0
    %p88 = por %p86, %p87
    %s90 = sadd.s32 %s89, 1
    %p93 = scmp.eq.s32.totalorder %s13, 1
    %p94 = scmp.ne.s32.totalorder %s89, %s91
    %p95 = scmp.eq.s32.totalorder %s13, 0
    %p96 = por %p94, %p95
    %p97 = scmp.ne.s32.totalorder %s89, %s91
    %p98 = scmp.eq.s32.totalorder %s18, 1
    %p99 = por %p97, %p98
    %p100 = scmp.ne.s32.totalorder %s91, %s92
    %p101 = scmp.eq.s32.totalorder %s18, 0
    %p102 = por %p100, %p101
    %p103 = scmp.ne.s32.totalorder %s91, %s92
    %p104 = scmp.eq.s32.totalorder %s19, 1
    %p105 = por %p103, %p104
    %p107 = scmp.ne.s32.totalorder %s92, %s106
    %p108 = scmp.eq.s32.totalorder %s19, 0
    %p109 = por %p107, %p108
    %s111 = sadd.s32 %s110, 1
    %p114 = scmp.eq.s32.totalorder %s13, 1
    %p115 = scmp.ne.s32.totalorder %s110, %s112
    %p116 = scmp.eq.s32.totalorder %s13, 0
    %p117 = por %p115, %p116
    %p118 = scmp.ne.s32.totalorder %s110, %s112
    %p119 = scmp.eq.s32.totalorder %s18, 1
    %p120 = por %p118, %p119
    %p121 = scmp.ne.s32.totalorder %s112, %s113
    %p122 = scmp.eq.s32.totalorder %s18, 0
    %p123 = por %p121, %p122
    %p124 = scmp.ne.s32.totalorder %s112, %s113
    %p125 = scmp.eq.s32.totalorder %s19, 1
    %p126 = por %p124, %p125
    %p128 = scmp.ne.s32.totalorder %s113, %s127
    %p129 = scmp.eq.s32.totalorder %s19, 0
    %p130 = por %p128, %p129
    %s132 = sadd.s32 %s131, 1
    %p135 = scmp.eq.s32.totalorder %s13, 1
    %p136 = scmp.ne.s32.totalorder %s131, %s133
    %p137 = scmp.eq.s32.totalorder %s13, 0
    %p138 = por %p136, %p137
    %p139 = scmp.ne.s32.totalorder %s131, %s133
    %p140 = scmp.eq.s32.totalorder %s18, 1
    %p141 = por %p139, %p140
    %p142 = scmp.ne.s32.totalorder %s133, %s134
    %p143 = scmp.eq.s32.totalorder %s18, 0
    %p144 = por %p142, %p143
    %p145 = scmp.ne.s32.totalorder %s133, %s134
    %p146 = scmp.eq.s32.totalorder %s19, 1
    %p147 = por %p145, %p146
    %p149 = scmp.ne.s32.totalorder %s134, %s148
    %p150 = scmp.eq.s32.totalorder %s19, 0
    %p151 = por %p149, %p150
    %s153 = sadd.s32 %s152, 1
    %p156 = scmp.eq.s32.totalorder %s13, 1
    %p157 = scmp.ne.s32.totalorder %s152, %s154
    %p158 = scmp.eq.s32.totalorder %s13, 0
    %p159 = por %p157, %p158
    %p160 = scmp.ne.s32.totalorder %s152, %s154
    %p161 = scmp.eq.s32.totalorder %s18, 1
    %p162 = por %p160, %p161
    %p163 = scmp.ne.s32.totalorder %s154, %s155
    %p164 = scmp.eq.s32.totalorder %s18, 0
    %p165 = por %p163, %p164
    %p166 = scmp.ne.s32.totalorder %s154, %s155
    %p167 = scmp.eq.s32.totalorder %s19, 1
    %p168 = por %p166, %p167
    %p170 = scmp.ne.s32.totalorder %s155, %s169
    %p171 = scmp.eq.s32.totalorder %s19, 0
    %p172 = por %p170, %p171
    %s173 = ssub.s32 %s13, %s20
    %p174 = scmp.eq.s32.totalorder %s173, 0
    %s176 = sadd.s32 %s175, 1
    %s177 = scalar_select %p174, %s175, %s176
    %p180 = pneg %p174
    %p181 = scmp.eq.s32.totalorder %s13, 1
    %p182 = por %p180, %p181
    %p183 = scmp.ne.s32.totalorder %s175, %s178
    %p184 = scmp.eq.s32.totalorder %s13, 0
    %p185 = por %p183, %p184
    %p186 = scmp.ne.s32.totalorder %s175, %s178
    %p187 = scmp.eq.s32.totalorder %s18, 1
    %p188 = por %p186, %p187
    %p189 = scmp.ne.s32.totalorder %s178, %s179
    %p190 = scmp.eq.s32.totalorder %s18, 0
    %p191 = por %p189, %p190
    %p192 = scmp.ne.s32.totalorder %s178, %s179
    %p193 = scmp.eq.s32.totalorder %s19, 1
    %p194 = por %p192, %p193
    %p196 = scmp.ne.s32.totalorder %s179, %s195
    %p197 = scmp.eq.s32.totalorder %s19, 0
    %p198 = por %p196, %p197
    %p199 = scmp.le.s32.totalorder 1, %s13
    %p200 = scmp.lt.s32.totalorder %s13, 3
    %p201 = pnand %p199, %p200
    %p202 = pneg %p201
    // Predicated region
    $region9: #{text_only_forward.8} parent=5 // pred_check
      _
    $region10: #{text_only_forward.8} parent=5 // pred_check_branch
      %204 = sbr.rel (%p201) target = $region12
    $region11: #{text_only_forward.8} parent=5 // pred_region
      %s205 = ssub.s32 %s13, 1
      // Predicated region
      $region13: #{text_only_forward.8} parent=11 // pred_check
        %p206 = pneg %p60
      $region14: #{text_only_forward.8} parent=11 // pred_check_branch
        %208 = sbr.rel (%p206) target = $region16
      $region15: #{text_only_forward.8} parent=11 // pred_region
        _
      $region16: #{text_only_forward.8} parent=11 // pred_fallthru
        _
      // Predicated region
      $region17: #{text_only_forward.8} parent=11 // pred_check
        %p209 = pneg %p81
      $region18: #{text_only_forward.8} parent=11 // pred_check_branch
        %211 = sbr.rel (%p209) target = $region20
      $region19: #{text_only_forward.8} parent=11 // pred_region
        _
      $region20: #{text_only_forward.8} parent=11 // pred_fallthru
        _
      // Predicated region
      $region21: #{text_only_forward.8} parent=11 // pred_check
        %p212 = pneg %p102
      $region22: #{text_only_forward.8} parent=11 // pred_check_branch
        %214 = sbr.rel (%p212) target = $region24
      $region23: #{text_only_forward.8} parent=11 // pred_region
        _
      $region24: #{text_only_forward.8} parent=11 // pred_fallthru
        _
      // Predicated region
      $region25: #{text_only_forward.8} parent=11 // pred_check
        %p215 = pneg %p123
      $region26: #{text_only_forward.8} parent=11 // pred_check_branch
        %217 = sbr.rel (%p215) target = $region28
      $region27: #{text_only_forward.8} parent=11 // pred_region
        _
      $region28: #{text_only_forward.8} parent=11 // pred_fallthru
        _
      // Predicated region
      $region29: #{text_only_forward.8} parent=11 // pred_check
        %p218 = pneg %p144
      $region30: #{text_only_forward.8} parent=11 // pred_check_branch
        %220 = sbr.rel (%p218) target = $region32
      $region31: #{text_only_forward.8} parent=11 // pred_region
        _
      $region32: #{text_only_forward.8} parent=11 // pred_fallthru
        _
      // Predicated region
      $region33: #{text_only_forward.8} parent=11 // pred_check
        %p221 = pneg %p165
      $region34: #{text_only_forward.8} parent=11 // pred_check_branch
        %223 = sbr.rel (%p221) target = $region36
      $region35: #{text_only_forward.8} parent=11 // pred_region
        _
      $region36: #{text_only_forward.8} parent=11 // pred_fallthru
        _
    $region12: #{text_only_forward.8} parent=5 // pred_fallthru
      _
    %p224 = scmp.lt.s32.totalorder %s13, 2
    // Predicated region
    $region37: #{text_only_forward.8} parent=5 // pred_check
      %p225 = pneg %p224
    $region38: #{text_only_forward.8} parent=5 // pred_check_branch
      %227 = sbr.rel (%p225) target = $region40
    $region39: #{text_only_forward.8} parent=5 // pred_region
      // Predicated region
      $region41: #{text_only_forward.8} parent=39 // pred_check
        %p228 = pneg %p33
      $region42: #{text_only_forward.8} parent=39 // pred_check_branch
        %230 = sbr.rel (%p228) target = $region44
      $region43: #{text_only_forward.8} parent=39 // pred_region
        %p231 = scmp.lt.s32.totalorder %s13, 1
        %s232 = scalar_select %p231, %s13, 1
        %s233 = smul.addr %s232, 4
        %s234 = scalar_lea.vmem %s0, %s233
      $region44: #{text_only_forward.8} parent=39 // pred_fallthru
        _
    $region40: #{text_only_forward.8} parent=5 // pred_fallthru
      _
    %p235 = scmp.le.s32.totalorder 1, %s13
    %p236 = scmp.lt.s32.totalorder %s13, 3
    %p237 = pnand %p235, %p236
    %p238 = pneg %p237
    // Predicated region
    $region45: #{text_only_forward.8} parent=5 // pred_check
      _
    $region46: #{text_only_forward.8} parent=5 // pred_check_branch
      %240 = sbr.rel (%p237) target = $region48
    $region47: #{text_only_forward.8} parent=5 // pred_region
      %s241 = ssub.s32 %s13, 1
      %p242 = scmp.lt.s32.totalorder %s18, 1
      %s243 = scalar_select %p242, %s18, 1
      %s244 = smul.addr %s243, 4
      %s245 = scalar_lea.vmem %s0, %s244
      %p246 = pneg %p39
      %p247 = pneg %p36
      %p248 = pneg %p60
      %p249 = pneg %p57
      %p250 = pneg %p81
      %p251 = pneg %p78
      %p252 = pneg %p102
      %p253 = pneg %p99
      %p254 = pneg %p123
      %p255 = pneg %p120
      %p256 = pneg %p144
      %p257 = pneg %p141
      %p258 = pneg %p165
      %p259 = pneg %p162
      %p260 = pneg %p191
      %p261 = pneg %p188
      %p262 = scmp.lt.s32.totalorder %s18, 1
      %s263 = scalar_select %p262, %s18, 1
      %s264 = smul.addr %s263, 4
      %s265 = scalar_lea.vmem %s7, %s264
      %p266 = scmp.lt.s32.totalorder %s18, 1
      %s267 = scalar_select %p266, %s18, 1
      %s268 = smul.addr %s267, 4
      %s269 = scalar_lea.vmem %s0, %s268
      %p270 = scmp.lt.s32.totalorder %s18, 1
      %s271 = scalar_select %p270, %s18, 1
      %s272 = smul.addr %s271, 4
      %s273 = scalar_lea.vmem %s7, %s272
      %v275 = vld [vmem:[%s269] sm:$0xf]
      %v276 = vld [vmem:[%s1] sm:$0xf]
      %v277 = vld [vmem:[%s1 + $0x4] sm:$0xf]
      %v278 = vld [vmem:[%s1 + $0x8] sm:$0xf]
      %v279 = vld [vmem:[%s1 + $0xc] sm:$0xf]
      %v280 = vld [vmem:[%s2] sm:$0x1]
      %v282 = vlaneseq
      %v283 = vshrl.u32 %v282, 7
      %v284 = vsub.s32 0, %v283
      %v285 = vrot.slane %v280, %v284
      %v291 = vunpack.c.l.b16 %v276
      %v292 = vunpack.c.l.b16 %v277
      %v293 = vunpack.c.l.b16 %v278
      %v294 = vunpack.c.l.b16 %v279
      %v295 = vpack.c.b16 %v292, %v291
      %v296 = vpack.c.b16 %v294, %v293
      %vm299 = vcmask 261120
      %v301 = vsel %vm299, %v275, 0
      %303 = vmatprep.subr.bf16.mxu0 0
      %304 = vmatpush1.bf16.msra.mxu0 0
      %305 = vmatprep.subr.bf16.mxu0 0
      %306 = vmatpush1.bf16.msra.mxu0 0
      %307 = vmatprep.subr.bf16.mxu0 0
      %308 = vmatpush1.bf16.msra.mxu0 0
      %309 = vmatprep.subr.bf16.mxu0 0
      %310 = vmatpush1.bf16.msra.mxu0 0
      %311 = vmatprep.subr.bf16.mxu0 0
      %312 = vmatpush1.bf16.msra.mxu0 0
      %313 = vmatprep.subr.bf16.mxu0 0
      %314 = vmatpush1.bf16.msra.mxu0 0
      %315 = vmatprep.subr.bf16.mxu0 0
      %316 = vmatpush1.bf16.msra.mxu0 %v296
      %317 = vmatprep.subr.bf16.mxu0 0
      %318 = vmatpush1.bf16.msra.mxu0 %v295
      %319 = vmatprep.subr.bf16.mxu0 0
      %320 = vmatpush2.bf16.msra.mxu0 0
      %321 = vmatprep.subr.bf16.mxu0 0
      %322 = vmatpush2.bf16.msra.mxu0 0
      %323 = vmatprep.subr.bf16.mxu0 0
      %324 = vmatpush2.bf16.msra.mxu0 0
      %325 = vmatprep.subr.bf16.mxu0 0
      %326 = vmatpush2.bf16.msra.mxu0 0
      %327 = vmatprep.subr.bf16.mxu0 0
      %328 = vmatpush2.bf16.msra.mxu0 0
      %329 = vmatprep.subr.bf16.mxu0 0
      %330 = vmatpush2.bf16.msra.mxu0 0
      %331 = vmatprep.subr.bf16.mxu0 0
      %332 = vmatpush2.bf16.msra.mxu0 0
      %333 = vmatprep.subr.bf16.mxu0 0
      %334 = vmatpush2.bf16.msra.mxu0 0
      %335 = vmatprep.mubr.bf16.mxu0 0
      %336 = vmatmul.mubr.bf16.gmra.mxu0 %v301
      %v337 = vpop.f32.mrf.mxu0
      %v338 = vadd.f32 %v285, %v337
      %v339 = vpop.f32.mrf.mxu0
      %v340 = vpop.f32.mrf.mxu0
      %v341 = vpop.f32.mrf.mxu0
      %342 = vdwg.mxu0
      %v343 = vmul.f32 %v338, 0.5
      %v344 = vmul.f32 %v338, 0.044715
      %v345 = vmul.f32 %v344, %v338
      %v346 = vmul.f32 %v345, %v338
      %v347 = vadd.f32 %v338, %v346
      %v348 = vmul.f32 %v347, 0.7978846
      %v349 = vtanh.pop %v348
      %v350 = vadd.f32 %v349, 1.0
      %v351 = vmul.f32 %v343, %v350
      %v352 = vpack.c.bf16 %v351, %v351
      %v353 = vld [vmem:[%s3] sm:$0xf]
      %v354 = vld [vmem:[%s3 + $0x4] sm:$0xf]
      %v355 = vld [vmem:[%s3 + $0x8] sm:$0xf]
      %v356 = vld [vmem:[%s3 + $0xc] sm:$0xf]
      %v357 = vld [vmem:[%s3 + $0x10] sm:$0xf]
      %v358 = vld [vmem:[%s3 + $0x14] sm:$0xf]
      %v359 = vld [vmem:[%s3 + $0x18] sm:$0xf]
      %v360 = vld [vmem:[%s3 + $0x1c] sm:$0xf]
      %v361 = vld [vmem:[%s4] sm:$0x1]
      %v363 = vlaneseq
      %v364 = vshrl.u32 %v363, 7
      %v365 = vsub.s32 0, %v364
      %v366 = vrot.slane %v361, %v365
      %v376 = vunpack.c.l.b16 %v353
      %v377 = vunpack.c.l.b16 %v354
      %v378 = vunpack.c.l.b16 %v355
      %v379 = vunpack.c.l.b16 %v356
      %v380 = vunpack.c.l.b16 %v357
      %v381 = vunpack.c.l.b16 %v358
      %v382 = vunpack.c.l.b16 %v359
      %v383 = vunpack.c.l.b16 %v360
      %v384 = vpack.c.b16 %v377, %v376
      %v385 = vpack.c.b16 %v379, %v378
      %v386 = vpack.c.b16 %v381, %v380
      %v387 = vpack.c.b16 %v383, %v382
      %vm392 = vcmask 523264
      %v394 = vsel %vm392, %v352, 0
      %396 = vmatprep.subr.bf16.mxu0 0
      %397 = vmatpush1.bf16.msra.mxu0 0
      %398 = vmatprep.subr.bf16.mxu0 0
      %399 = vmatpush1.bf16.msra.mxu0 0
      %400 = vmatprep.subr.bf16.mxu0 0
      %401 = vmatpush1.bf16.msra.mxu0 0
      %402 = vmatprep.subr.bf16.mxu0 0
      %403 = vmatpush1.bf16.msra.mxu0 0
      %404 = vmatprep.subr.bf16.mxu0 0
      %405 = vmatpush1.bf16.msra.mxu0 %v387
      %406 = vmatprep.subr.bf16.mxu0 0
      %407 = vmatpush1.bf16.msra.mxu0 %v386
      %408 = vmatprep.subr.bf16.mxu0 0
      %409 = vmatpush1.bf16.msra.mxu0 %v385
      %410 = vmatprep.subr.bf16.mxu0 0
      %411 = vmatpush1.bf16.msra.mxu0 %v384
      %412 = vmatprep.subr.bf16.mxu0 0
      %413 = vmatpush2.bf16.msra.mxu0 0
      %414 = vmatprep.subr.bf16.mxu0 0
      %415 = vmatpush2.bf16.msra.mxu0 0
      %416 = vmatprep.subr.bf16.mxu0 0
      %417 = vmatpush2.bf16.msra.mxu0 0
      %418 = vmatprep.subr.bf16.mxu0 0
      %419 = vmatpush2.bf16.msra.mxu0 0
      %420 = vmatprep.subr.bf16.mxu0 0
      %421 = vmatpush2.bf16.msra.mxu0 0
      %422 = vmatprep.subr.bf16.mxu0 0
      %423 = vmatpush2.bf16.msra.mxu0 0
      %424 = vmatprep.subr.bf16.mxu0 0
      %425 = vmatpush2.bf16.msra.mxu0 0
      %426 = vmatprep.subr.bf16.mxu0 0
      %427 = vmatpush2.bf16.msra.mxu0 0
      %428 = vmatprep.mubr.bf16.mxu0 0
      %429 = vmatmul.mubr.bf16.gmra.mxu0 %v394
      %v430 = vpop.f32.mrf.mxu0
      %v431 = vadd.f32 %v366, %v430
      %v432 = vpop.f32.mrf.mxu0
      %v433 = vpop.f32.mrf.mxu0
      %v434 = vpop.f32.mrf.mxu0
      %435 = vdwg.mxu0
      %v436 = vunpack.c.l.bf16 %v275
      %v437 = vadd.f32 %v431, %v436
      %v438 = vsel %vm299, %v437, 0.0
      %439 = vadd.xlane.f32.xlu0 %v438
      %v440 = vpop.xlane.xlu0 %439
      %v441 = vrcp.pop 32.0
      %v442 = vmul.f32 %v440, %v441
      %v443 = vsub.f32 %v437, %v442
      %v444 = vmul.f32 %v443, %v443
      %v445 = vsel %vm299, %v444, 0.0
      %446 = vadd.xlane.f32.xlu0 %v445
      %v447 = vpop.xlane.xlu0 %446
      %v448 = vmul.f32 %v447, %v441
      %v449 = vadd.f32 %v448, 1e-12
      %v450 = vrsqrt.pop %v449
      %v451 = vmul.f32 %v443, %v450
      %v452 = vld [vmem:[%s5] sm:$0x1]
      %v454 = vlaneseq
      %v455 = vshrl.u32 %v454, 7
      %v456 = vsub.s32 0, %v455
      %v457 = vrot.slane %v452, %v456
      %v459 = vmul.f32 %v451, %v457
      %v460 = vld [vmem:[%s6] sm:$0x1]
      %v462 = vlaneseq
      %v463 = vshrl.u32 %v462, 7
      %v464 = vsub.s32 0, %v463
      %v465 = vrot.slane %v460, %v464
      %v467 = vadd.f32 %v459, %v465
      %v468 = vpack.c.bf16 %v467, %v467
      %vm469 = vcmask 257024
      %470 = vst.msk [vmem:[%s273] sm:$0xf] %vm469, %v468
      %p471 = scmp.lt.s32.totalorder %s18, 1
      %s472 = scalar_select %p471, %s18, 1
      %s473 = smul.addr %s472, 4
      %s474 = scalar_lea.vmem %s7, %s473
      // Predicated region
      $region49: #{text_only_forward.8} parent=47 // pred_check
        %p475 = pneg %p188
      $region50: #{text_only_forward.8} parent=47 // pred_check_branch
        %477 = sbr.rel (%p475) target = $region52
      $region51: #{text_only_forward.8} parent=47 // pred_region
        _
      $region52: #{text_only_forward.8} parent=47 // pred_fallthru
        _
    $region48: #{text_only_forward.8} parent=5 // pred_fallthru
      _
    %p478 = scmp.le.s32.totalorder 2, %s13
    // Predicated region
    $region53: #{text_only_forward.8} parent=5 // pred_check
      %p479 = pneg %p478
    $region54: #{text_only_forward.8} parent=5 // pred_check_branch
      %481 = sbr.rel (%p479) target = $region56
    $region55: #{text_only_forward.8} parent=5 // pred_region
      %s482 = ssub.s32 %s13, 2
      // Predicated region
      $region57: #{text_only_forward.8} parent=55 // pred_check
        %p483 = pneg %p194
      $region58: #{text_only_forward.8} parent=55 // pred_check_branch
        %485 = sbr.rel (%p483) target = $region60
      $region59: #{text_only_forward.8} parent=55 // pred_region
        %p486 = scmp.lt.s32.totalorder %s19, 1
        %s487 = scalar_select %p486, %s19, 1
        %s488 = smul.addr %s487, 4
        %s489 = scalar_lea.vmem %s7, %s488
      $region60: #{text_only_forward.8} parent=55 // pred_fallthru
        _
    $region56: #{text_only_forward.8} parent=5 // pred_fallthru
      _
  $region6: #{text_only_forward.8} parent=0 // loop_footer
    %s17 = sadd.s32 1, %s13
  $region7: #{text_only_forward.8} parent=0 // loop_footer_branch
    %12 = sbr.rel target = $region3
  $region8: #{text_only_forward.8} parent=0 // loop_exit
    _

// kernel: text_only_forward.6
$region0: #{text_only_forward.6}
  #allocation0 [shape = 'u32[]', space=smem, size = 0x4, offset = 0x4, fixed_abs, tag = 'smem constant byte address 0x4 - core index']
  #allocation1 [shape = 'u32[144,128]{1,0:T(1,128)}', space=vmem, size = 0x12000, scoped, tag = 'internal scratch']
  %s0 = inlined_call_operand.vmem [shape: f32[2,8,32], index: 0, kind: input, shape index: {}]
  %s1 = inlined_call_operand.vmem [shape: f32[1,32], index: 1, kind: input, shape index: {}]
  %s2 = inlined_call_operand.vmem [shape: f32[1,32], index: 2, kind: input, shape index: {}]
  %s3 = inlined_call_operand.vmem [shape: bf16[2,8,32], index: 3, kind: output, shape index: {}]
  %s4 = sld [smem:[#allocation0]]
  $region45: #{text_only_forward.6} parent=0
    _
  %s6 = ssub.s32 1, %s4
  %s7 = scalar_select 0, %s6, %s4
  loop: start=0, step=1, limit=4
  $region2: #{text_only_forward.6} parent=0 // loop_pre_header
    _
  $region3: #{text_only_forward.6} parent=0 // loop_header
    %s9 = sphi 0, %s13
    %p10 = scmp.ge.s32.totalorder %s9, 4
    %s19 = sphi 0, %s21
    %s22 = sphi 0, %s19
    %s23 = sphi 0, %s22
    %s39 = sphi 0, %s23
    %s43 = sphi 0, %s43
    %s45 = sphi 0, %s43
    %s46 = sphi 0, %s45
    %s60 = sphi 0, %s46
    %s64 = sphi 0, %s64
    %s66 = sphi 0, %s64
    %s67 = sphi 0, %s66
    %s81 = sphi 0, %s67
    %s87 = sphi 0, %s89
    %s90 = sphi 0, %s87
    %s91 = sphi 0, %s90
    %s107 = sphi 0, %s91
  $region4: #{text_only_forward.6} parent=0 // loop_header_branch
    %12 = sbr.rel (%p10) target = $region8
  $region5: #{text_only_forward.6} parent=0 // loop_body
    %s14 = ssub.s32 %s9, 1
    %s15 = ssub.s32 %s9, 2
    %s16 = sadd.s32 %s9, 1
    %s17 = ssub.s32 %s9, %s16
    %p18 = scmp.eq.s32.totalorder %s17, 0
    %s20 = sadd.s32 %s19, 1
    %s21 = scalar_select %p18, %s19, %s20
    %p24 = pneg %p18
    %p25 = scmp.eq.s32.totalorder %s9, 1
    %p26 = por %p24, %p25
    %p27 = scmp.ne.s32.totalorder %s19, %s22
    %p28 = scmp.eq.s32.totalorder %s9, 0
    %p29 = por %p27, %p28
    %p30 = scmp.ne.s32.totalorder %s19, %s22
    %p31 = scmp.eq.s32.totalorder %s14, 1
    %p32 = por %p30, %p31
    %p33 = scmp.ne.s32.totalorder %s22, %s23
    %p34 = scmp.eq.s32.totalorder %s14, 0
    %p35 = por %p33, %p34
    %p36 = scmp.ne.s32.totalorder %s22, %s23
    %p37 = scmp.eq.s32.totalorder %s15, 1
    %p38 = por %p36, %p37
    %p40 = scmp.ne.s32.totalorder %s23, %s39
    %p41 = scmp.eq.s32.totalorder %s15, 0
    %p42 = por %p40, %p41
    %s44 = sadd.s32 %s43, 1
    %p47 = scmp.eq.s32.totalorder %s9, 1
    %p48 = scmp.ne.s32.totalorder %s43, %s45
    %p49 = scmp.eq.s32.totalorder %s9, 0
    %p50 = por %p48, %p49
    %p51 = scmp.ne.s32.totalorder %s43, %s45
    %p52 = scmp.eq.s32.totalorder %s14, 1
    %p53 = por %p51, %p52
    %p54 = scmp.ne.s32.totalorder %s45, %s46
    %p55 = scmp.eq.s32.totalorder %s14, 0
    %p56 = por %p54, %p55
    %p57 = scmp.ne.s32.totalorder %s45, %s46
    %p58 = scmp.eq.s32.totalorder %s15, 1
    %p59 = por %p57, %p58
    %p61 = scmp.ne.s32.totalorder %s46, %s60
    %p62 = scmp.eq.s32.totalorder %s15, 0
    %p63 = por %p61, %p62
    %s65 = sadd.s32 %s64, 1
    %p68 = scmp.eq.s32.totalorder %s9, 1
    %p69 = scmp.ne.s32.totalorder %s64, %s66
    %p70 = scmp.eq.s32.totalorder %s9, 0
    %p71 = por %p69, %p70
    %p72 = scmp.ne.s32.totalorder %s64, %s66
    %p73 = scmp.eq.s32.totalorder %s14, 1
    %p74 = por %p72, %p73
    %p75 = scmp.ne.s32.totalorder %s66, %s67
    %p76 = scmp.eq.s32.totalorder %s14, 0
    %p77 = por %p75, %p76
    %p78 = scmp.ne.s32.totalorder %s66, %s67
    %p79 = scmp.eq.s32.totalorder %s15, 1
    %p80 = por %p78, %p79
    %p82 = scmp.ne.s32.totalorder %s67, %s81
    %p83 = scmp.eq.s32.totalorder %s15, 0
    %p84 = por %p82, %p83
    %s85 = ssub.s32 %s9, %s16
    %p86 = scmp.eq.s32.totalorder %s85, 0
    %s88 = sadd.s32 %s87, 1
    %s89 = scalar_select %p86, %s87, %s88
    %p92 = pneg %p86
    %p93 = scmp.eq.s32.totalorder %s9, 1
    %p94 = por %p92, %p93
    %p95 = scmp.ne.s32.totalorder %s87, %s90
    %p96 = scmp.eq.s32.totalorder %s9, 0
    %p97 = por %p95, %p96
    %p98 = scmp.ne.s32.totalorder %s87, %s90
    %p99 = scmp.eq.s32.totalorder %s14, 1
    %p100 = por %p98, %p99
    %p101 = scmp.ne.s32.totalorder %s90, %s91
    %p102 = scmp.eq.s32.totalorder %s14, 0
    %p103 = por %p101, %p102
    %p104 = scmp.ne.s32.totalorder %s90, %s91
    %p105 = scmp.eq.s32.totalorder %s15, 1
    %p106 = por %p104, %p105
    %p108 = scmp.ne.s32.totalorder %s91, %s107
    %p109 = scmp.eq.s32.totalorder %s15, 0
    %p110 = por %p108, %p109
    %p111 = scmp.le.s32.totalorder 1, %s9
    %p112 = scmp.lt.s32.totalorder %s9, 3
    %p113 = pnand %p111, %p112
    %p114 = pneg %p113
    // Predicated region
    $region9: #{text_only_forward.6} parent=5 // pred_check
      _
    $region10: #{text_only_forward.6} parent=5 // pred_check_branch
      %116 = sbr.rel (%p113) target = $region12
    $region11: #{text_only_forward.6} parent=5 // pred_region
      %s117 = ssub.s32 %s9, 1
      // Predicated region
      $region13: #{text_only_forward.6} parent=11 // pred_check
        %p118 = pneg %p56
      $region14: #{text_only_forward.6} parent=11 // pred_check_branch
        %120 = sbr.rel (%p118) target = $region16
      $region15: #{text_only_forward.6} parent=11 // pred_region
        _
      $region16: #{text_only_forward.6} parent=11 // pred_fallthru
        _
      // Predicated region
      $region17: #{text_only_forward.6} parent=11 // pred_check
        %p121 = pneg %p77
      $region18: #{text_only_forward.6} parent=11 // pred_check_branch
        %123 = sbr.rel (%p121) target = $region20
      $region19: #{text_only_forward.6} parent=11 // pred_region
        _
      $region20: #{text_only_forward.6} parent=11 // pred_fallthru
        _
    $region12: #{text_only_forward.6} parent=5 // pred_fallthru
      _
    %p124 = scmp.lt.s32.totalorder %s9, 2
    // Predicated region
    $region21: #{text_only_forward.6} parent=5 // pred_check
      %p125 = pneg %p124
    $region22: #{text_only_forward.6} parent=5 // pred_check_branch
      %127 = sbr.rel (%p125) target = $region24
    $region23: #{text_only_forward.6} parent=5 // pred_region
      // Predicated region
      $region25: #{text_only_forward.6} parent=23 // pred_check
        %p128 = pneg %p29
      $region26: #{text_only_forward.6} parent=23 // pred_check_branch
        %130 = sbr.rel (%p128) target = $region28
      $region27: #{text_only_forward.6} parent=23 // pred_region
        %p131 = scmp.lt.s32.totalorder %s9, 1
        %s132 = scalar_select %p131, %s9, 1
        %s133 = smul.addr %s132, 8
        %s134 = scalar_lea.vmem %s0, %s133
      $region28: #{text_only_forward.6} parent=23 // pred_fallthru
        _
    $region24: #{text_only_forward.6} parent=5 // pred_fallthru
      _
    %p135 = scmp.le.s32.totalorder 1, %s9
    %p136 = scmp.lt.s32.totalorder %s9, 3
    %p137 = pnand %p135, %p136
    %p138 = pneg %p137
    // Predicated region
    $region29: #{text_only_forward.6} parent=5 // pred_check
      _
    $region30: #{text_only_forward.6} parent=5 // pred_check_branch
      %140 = sbr.rel (%p137) target = $region32
    $region31: #{text_only_forward.6} parent=5 // pred_region
      %s141 = ssub.s32 %s9, 1
      %p142 = scmp.lt.s32.totalorder %s14, 1
      %s143 = scalar_select %p142, %s14, 1
      %s144 = smul.addr %s143, 8
      %s145 = scalar_lea.vmem %s0, %s144
      %p146 = pneg %p35
      %p147 = pneg %p32
      %p148 = pneg %p56
      %p149 = pneg %p53
      %p150 = pneg %p77
      %p151 = pneg %p74
      %p152 = pneg %p103
      %p153 = pneg %p100
      %p154 = scmp.lt.s32.totalorder %s14, 1
      %s155 = scalar_select %p154, %s14, 1
      %s156 = smul.addr %s155, 4
      %s157 = scalar_lea.vmem %s3, %s156
      %p158 = scmp.lt.s32.totalorder %s14, 1
      %s159 = scalar_select %p158, %s14, 1
      %s160 = smul.addr %s159, 8
      %s161 = scalar_lea.vmem %s0, %s160
      %p162 = scmp.lt.s32.totalorder %s14, 1
      %s163 = scalar_select %p162, %s14, 1
      %s164 = smul.addr %s163, 4
      %s165 = scalar_lea.vmem %s3, %s164
      %v166 = vld [vmem:[%s161] sm:$0xff]
      %vm167 = vcmask 261120
      %v168 = vsel %vm167, %v166, 0.0
      %169 = vadd.xlane.f32.xlu0 %v168
      %v170 = vpop.xlane.xlu0 %169
      %v171 = vrcp.pop 32.0
      %v172 = vmul.f32 %v170, %v171
      %v173 = vsub.f32 %v166, %v172
      %v174 = vmul.f32 %v173, %v173
      %v175 = vsel %vm167, %v174, 0.0
      %176 = vadd.xlane.f32.xlu0 %v175
      %v177 = vpop.xlane.xlu0 %176
      %v178 = vmul.f32 %v177, %v171
      %v179 = vadd.f32 %v178, 1e-12
      %v180 = vrsqrt.pop %v179
      %v181 = vmul.f32 %v173, %v180
      %v182 = vld [vmem:[%s1] sm:$0x1]
      %v184 = vlaneseq
      %v185 = vshrl.u32 %v184, 7
      %v186 = vsub.s32 0, %v185
      %v187 = vrot.slane %v182, %v186
      %v189 = vmul.f32 %v181, %v187
      %v190 = vld [vmem:[%s2] sm:$0x1]
      %v192 = vlaneseq
      %v193 = vshrl.u32 %v192, 7
      %v194 = vsub.s32 0, %v193
      %v195 = vrot.slane %v190, %v194
      %v197 = vadd.f32 %v189, %v195
      %v198 = vpack.c.bf16 %v197, %v197
      %vm199 = vcmask 257024
      %200 = vst.msk [vmem:[%s165] sm:$0xf] %vm199, %v198
      %p201 = scmp.lt.s32.totalorder %s14, 1
      %s202 = scalar_select %p201, %s14, 1
      %s203 = smul.addr %s202, 4
      %s204 = scalar_lea.vmem %s3, %s203
      // Predicated region
      $region33: #{text_only_forward.6} parent=31 // pred_check
        %p205 = pneg %p100
      $region34: #{text_only_forward.6} parent=31 // pred_check_branch
        %207 = sbr.rel (%p205) target = $region36
      $region35: #{text_only_forward.6} parent=31 // pred_region
        _
      $region36: #{text_only_forward.6} parent=31 // pred_fallthru
        _
    $region32: #{text_only_forward.6} parent=5 // pred_fallthru
      _
    %p208 = scmp.le.s32.totalorder 2, %s9
    // Predicated region
    $region37: #{text_only_forward.6} parent=5 // pred_check
      %p209 = pneg %p208
    $region38: #{text_only_forward.6} parent=5 // pred_check_branch
      %211 = sbr.rel (%p209) target = $region40
    $region39: #{text_only_forward.6} parent=5 // pred_region
      %s212 = ssub.s32 %s9, 2
      // Predicated region
      $region41: #{text_only_forward.6} parent=39 // pred_check
        %p213 = pneg %p106
      $region42: #{text_only_forward.6} parent=39 // pred_check_branch
        %215 = sbr.rel (%p213) target = $region44
      $region43: #{text_only_forward.6} parent=39 // pred_region
        %p216 = scmp.lt.s32.totalorder %s15, 1
        %s217 = scalar_select %p216, %s15, 1
        %s218 = smul.addr %s217, 4
        %s219 = scalar_lea.vmem %s3, %s218
      $region44: #{text_only_forward.6} parent=39 // pred_fallthru
        _
    $region40: #{text_only_forward.6} parent=5 // pred_fallthru
      _
  $region6: #{text_only_forward.6} parent=0 // loop_footer
    %s13 = sadd.s32 1, %s9
  $region7: #{text_only_forward.6} parent=0 // loop_footer_branch
    %8 = sbr.rel target = $region3
  $region8: #{text_only_forward.6} parent=0 // loop_exit
    _

// kernel: text_only_forward.7
$region0: #{text_only_forward.7}
  #allocation0 [shape = 'u32[]', space=smem, size = 0x4, offset = 0x4, fixed_abs, tag = 'smem constant byte address 0x4 - core index']
  #allocation1 [shape = 'u32[144,128]{1,0:T(1,128)}', space=vmem, size = 0x12000, scoped, tag = 'internal scratch']
  %s0 = inlined_call_operand.vmem [shape: bf16[2,8,32], index: 0, kind: input, shape index: {}]
  %s1 = inlined_call_operand.vmem [shape: f32[2,1,8], index: 1, kind: input, shape index: {}]
  %s2 = inlined_call_operand.vmem [shape: bf16[32,96], index: 2, kind: input, shape index: {}]
  %s3 = inlined_call_operand.vmem [shape: f32[1,96], index: 3, kind: input, shape index: {}]
  %s4 = inlined_call_operand.vmem [shape: bf16[32,32], index: 4, kind: input, shape index: {}]
  %s5 = inlined_call_operand.vmem [shape: f32[1,32], index: 5, kind: input, shape index: {}]
  %s6 = inlined_call_operand.vmem [shape: f32[1,32], index: 6, kind: input, shape index: {}]
  %s7 = inlined_call_operand.vmem [shape: f32[1,32], index: 7, kind: input, shape index: {}]
  %s8 = inlined_call_operand.vmem [shape: bf16[2,8,32], index: 8, kind: output, shape index: {}]
  %s9 = sld [smem:[#allocation0]]
  $region65: #{text_only_forward.7} parent=0
    _
  %s11 = ssub.s32 1, %s9
  %s12 = scalar_select 0, %s11, %s9
  loop: start=0, step=1, limit=4
  $region2: #{text_only_forward.7} parent=0 // loop_pre_header
    _
  $region3: #{text_only_forward.7} parent=0 // loop_header
    %s14 = sphi 0, %s18
    %p15 = scmp.ge.s32.totalorder %s14, 4
    %s24 = sphi 0, %s26
    %s27 = sphi 0, %s24
    %s28 = sphi 0, %s27
    %s44 = sphi 0, %s28
    %s50 = sphi 0, %s52
    %s53 = sphi 0, %s50
    %s54 = sphi 0, %s53
    %s70 = sphi 0, %s54
    %s74 = sphi 0, %s74
    %s76 = sphi 0, %s74
    %s77 = sphi 0, %s76
    %s91 = sphi 0, %s77
    %s95 = sphi 0, %s95
    %s97 = sphi 0, %s95
    %s98 = sphi 0, %s97
    %s112 = sphi 0, %s98
    %s116 = sphi 0, %s116
    %s118 = sphi 0, %s116
    %s119 = sphi 0, %s118
    %s133 = sphi 0, %s119
    %s137 = sphi 0, %s137
    %s139 = sphi 0, %s137
    %s140 = sphi 0, %s139
    %s154 = sphi 0, %s140
    %s158 = sphi 0, %s158
    %s160 = sphi 0, %s158
    %s161 = sphi 0, %s160
    %s175 = sphi 0, %s161
    %s179 = sphi 0, %s179
    %s181 = sphi 0, %s179
    %s182 = sphi 0, %s181
    %s196 = sphi 0, %s182
    %s202 = sphi 0, %s204
    %s205 = sphi 0, %s202
    %s206 = sphi 0, %s205
    %s222 = sphi 0, %s206
  $region4: #{text_only_forward.7} parent=0 // loop_header_branch
    %17 = sbr.rel (%p15) target = $region8
  $region5: #{text_only_forward.7} parent=0 // loop_body
    %s19 = ssub.s32 %s14, 1
    %s20 = ssub.s32 %s14, 2
    %s21 = sadd.s32 %s14, 1
    %s22 = ssub.s32 %s14, %s21
    %p23 = scmp.eq.s32.totalorder %s22, 0
    %s25 = sadd.s32 %s24, 1
    %s26 = scalar_select %p23, %s24, %s25
    %p29 = pneg %p23
    %p30 = scmp.eq.s32.totalorder %s14, 1
    %p31 = por %p29, %p30
    %p32 = scmp.ne.s32.totalorder %s24, %s27
    %p33 = scmp.eq.s32.totalorder %s14, 0
    %p34 = por %p32, %p33
    %p35 = scmp.ne.s32.totalorder %s24, %s27
    %p36 = scmp.eq.s32.totalorder %s19, 1
    %p37 = por %p35, %p36
    %p38 = scmp.ne.s32.totalorder %s27, %s28
    %p39 = scmp.eq.s32.totalorder %s19, 0
    %p40 = por %p38, %p39
    %p41 = scmp.ne.s32.totalorder %s27, %s28
    %p42 = scmp.eq.s32.totalorder %s20, 1
    %p43 = por %p41, %p42
    %p45 = scmp.ne.s32.totalorder %s28, %s44
    %p46 = scmp.eq.s32.totalorder %s20, 0
    %p47 = por %p45, %p46
    %s48 = ssub.s32 %s14, %s21
    %p49 = scmp.eq.s32.totalorder %s48, 0
    %s51 = sadd.s32 %s50, 1
    %s52 = scalar_select %p49, %s50, %s51
    %p55 = pneg %p49
    %p56 = scmp.eq.s32.totalorder %s14, 1
    %p57 = por %p55, %p56
    %p58 = scmp.ne.s32.totalorder %s50, %s53
    %p59 = scmp.eq.s32.totalorder %s14, 0
    %p60 = por %p58, %p59
    %p61 = scmp.ne.s32.totalorder %s50, %s53
    %p62 = scmp.eq.s32.totalorder %s19, 1
    %p63 = por %p61, %p62
    %p64 = scmp.ne.s32.totalorder %s53, %s54
    %p65 = scmp.eq.s32.totalorder %s19, 0
    %p66 = por %p64, %p65
    %p67 = scmp.ne.s32.totalorder %s53, %s54
    %p68 = scmp.eq.s32.totalorder %s20, 1
    %p69 = por %p67, %p68
    %p71 = scmp.ne.s32.totalorder %s54, %s70
    %p72 = scmp.eq.s32.totalorder %s20, 0
    %p73 = por %p71, %p72
    %s75 = sadd.s32 %s74, 1
    %p78 = scmp.eq.s32.totalorder %s14, 1
    %p79 = scmp.ne.s32.totalorder %s74, %s76
    %p80 = scmp.eq.s32.totalorder %s14, 0
    %p81 = por %p79, %p80
    %p82 = scmp.ne.s32.totalorder %s74, %s76
    %p83 = scmp.eq.s32.totalorder %s19, 1
    %p84 = por %p82, %p83
    %p85 = scmp.ne.s32.totalorder %s76, %s77
    %p86 = scmp.eq.s32.totalorder %s19, 0
    %p87 = por %p85, %p86
    %p88 = scmp.ne.s32.totalorder %s76, %s77
    %p89 = scmp.eq.s32.totalorder %s20, 1
    %p90 = por %p88, %p89
    %p92 = scmp.ne.s32.totalorder %s77, %s91
    %p93 = scmp.eq.s32.totalorder %s20, 0
    %p94 = por %p92, %p93
    %s96 = sadd.s32 %s95, 1
    %p99 = scmp.eq.s32.totalorder %s14, 1
    %p100 = scmp.ne.s32.totalorder %s95, %s97
    %p101 = scmp.eq.s32.totalorder %s14, 0
    %p102 = por %p100, %p101
    %p103 = scmp.ne.s32.totalorder %s95, %s97
    %p104 = scmp.eq.s32.totalorder %s19, 1
    %p105 = por %p103, %p104
    %p106 = scmp.ne.s32.totalorder %s97, %s98
    %p107 = scmp.eq.s32.totalorder %s19, 0
    %p108 = por %p106, %p107
    %p109 = scmp.ne.s32.totalorder %s97, %s98
    %p110 = scmp.eq.s32.totalorder %s20, 1
    %p111 = por %p109, %p110
    %p113 = scmp.ne.s32.totalorder %s98, %s112
    %p114 = scmp.eq.s32.totalorder %s20, 0
    %p115 = por %p113, %p114
    %s117 = sadd.s32 %s116, 1
    %p120 = scmp.eq.s32.totalorder %s14, 1
    %p121 = scmp.ne.s32.totalorder %s116, %s118
    %p122 = scmp.eq.s32.totalorder %s14, 0
    %p123 = por %p121, %p122
    %p124 = scmp.ne.s32.totalorder %s116, %s118
    %p125 = scmp.eq.s32.totalorder %s19, 1
    %p126 = por %p124, %p125
    %p127 = scmp.ne.s32.totalorder %s118, %s119
    %p128 = scmp.eq.s32.totalorder %s19, 0
    %p129 = por %p127, %p128
    %p130 = scmp.ne.s32.totalorder %s118, %s119
    %p131 = scmp.eq.s32.totalorder %s20, 1
    %p132 = por %p130, %p131
    %p134 = scmp.ne.s32.totalorder %s119, %s133
    %p135 = scmp.eq.s32.totalorder %s20, 0
    %p136 = por %p134, %p135
    %s138 = sadd.s32 %s137, 1
    %p141 = scmp.eq.s32.totalorder %s14, 1
    %p142 = scmp.ne.s32.totalorder %s137, %s139
    %p143 = scmp.eq.s32.totalorder %s14, 0
    %p144 = por %p142, %p143
    %p145 = scmp.ne.s32.totalorder %s137, %s139
    %p146 = scmp.eq.s32.totalorder %s19, 1
    %p147 = por %p145, %p146
    %p148 = scmp.ne.s32.totalorder %s139, %s140
    %p149 = scmp.eq.s32.totalorder %s19, 0
    %p150 = por %p148, %p149
    %p151 = scmp.ne.s32.totalorder %s139, %s140
    %p152 = scmp.eq.s32.totalorder %s20, 1
    %p153 = por %p151, %p152
    %p155 = scmp.ne.s32.totalorder %s140, %s154
    %p156 = scmp.eq.s32.totalorder %s20, 0
    %p157 = por %p155, %p156
    %s159 = sadd.s32 %s158, 1
    %p162 = scmp.eq.s32.totalorder %s14, 1
    %p163 = scmp.ne.s32.totalorder %s158, %s160
    %p164 = scmp.eq.s32.totalorder %s14, 0
    %p165 = por %p163, %p164
    %p166 = scmp.ne.s32.totalorder %s158, %s160
    %p167 = scmp.eq.s32.totalorder %s19, 1
    %p168 = por %p166, %p167
    %p169 = scmp.ne.s32.totalorder %s160, %s161
    %p170 = scmp.eq.s32.totalorder %s19, 0
    %p171 = por %p169, %p170
    %p172 = scmp.ne.s32.totalorder %s160, %s161
    %p173 = scmp.eq.s32.totalorder %s20, 1
    %p174 = por %p172, %p173
    %p176 = scmp.ne.s32.totalorder %s161, %s175
    %p177 = scmp.eq.s32.totalorder %s20, 0
    %p178 = por %p176, %p177
    %s180 = sadd.s32 %s179, 1
    %p183 = scmp.eq.s32.totalorder %s14, 1
    %p184 = scmp.ne.s32.totalorder %s179, %s181
    %p185 = scmp.eq.s32.totalorder %s14, 0
    %p186 = por %p184, %p185
    %p187 = scmp.ne.s32.totalorder %s179, %s181
    %p188 = scmp.eq.s32.totalorder %s19, 1
    %p189 = por %p187, %p188
    %p190 = scmp.ne.s32.totalorder %s181, %s182
    %p191 = scmp.eq.s32.totalorder %s19, 0
    %p192 = por %p190, %p191
    %p193 = scmp.ne.s32.totalorder %s181, %s182
    %p194 = scmp.eq.s32.totalorder %s20, 1
    %p195 = por %p193, %p194
    %p197 = scmp.ne.s32.totalorder %s182, %s196
    %p198 = scmp.eq.s32.totalorder %s20, 0
    %p199 = por %p197, %p198
    %s200 = ssub.s32 %s14, %s21
    %p201 = scmp.eq.s32.totalorder %s200, 0
    %s203 = sadd.s32 %s202, 1
    %s204 = scalar_select %p201, %s202, %s203
    %p207 = pneg %p201
    %p208 = scmp.eq.s32.totalorder %s14, 1
    %p209 = por %p207, %p208
    %p210 = scmp.ne.s32.totalorder %s202, %s205
    %p211 = scmp.eq.s32.totalorder %s14, 0
    %p212 = por %p210, %p211
    %p213 = scmp.ne.s32.totalorder %s202, %s205
    %p214 = scmp.eq.s32.totalorder %s19, 1
    %p215 = por %p213, %p214
    %p216 = scmp.ne.s32.totalorder %s205, %s206
    %p217 = scmp.eq.s32.totalorder %s19, 0
    %p218 = por %p216, %p217
    %p219 = scmp.ne.s32.totalorder %s205, %s206
    %p220 = scmp.eq.s32.totalorder %s20, 1
    %p221 = por %p219, %p220
    %p223 = scmp.ne.s32.totalorder %s206, %s222
    %p224 = scmp.eq.s32.totalorder %s20, 0
    %p225 = por %p223, %p224
    %p226 = scmp.le.s32.totalorder 1, %s14
    %p227 = scmp.lt.s32.totalorder %s14, 3
    %p228 = pnand %p226, %p227
    %p229 = pneg %p228
    // Predicated region
    $region9: #{text_only_forward.7} parent=5 // pred_check
      _
    $region10: #{text_only_forward.7} parent=5 // pred_check_branch
      %231 = sbr.rel (%p228) target = $region12
    $region11: #{text_only_forward.7} parent=5 // pred_region
      %s232 = ssub.s32 %s14, 1
      // Predicated region
      $region13: #{text_only_forward.7} parent=11 // pred_check
        %p233 = pneg %p87
      $region14: #{text_only_forward.7} parent=11 // pred_check_branch
        %235 = sbr.rel (%p233) target = $region16
      $region15: #{text_only_forward.7} parent=11 // pred_region
        _
      $region16: #{text_only_forward.7} parent=11 // pred_fallthru
        _
      // Predicated region
      $region17: #{text_only_forward.7} parent=11 // pred_check
        %p236 = pneg %p108
      $region18: #{text_only_forward.7} parent=11 // pred_check_branch
        %238 = sbr.rel (%p236) target = $region20
      $region19: #{text_only_forward.7} parent=11 // pred_region
        _
      $region20: #{text_only_forward.7} parent=11 // pred_fallthru
        _
      // Predicated region
      $region21: #{text_only_forward.7} parent=11 // pred_check
        %p239 = pneg %p129
      $region22: #{text_only_forward.7} parent=11 // pred_check_branch
        %241 = sbr.rel (%p239) target = $region24
      $region23: #{text_only_forward.7} parent=11 // pred_region
        _
      $region24: #{text_only_forward.7} parent=11 // pred_fallthru
        _
      // Predicated region
      $region25: #{text_only_forward.7} parent=11 // pred_check
        %p242 = pneg %p150
      $region26: #{text_only_forward.7} parent=11 // pred_check_branch
        %244 = sbr.rel (%p242) target = $region28
      $region27: #{text_only_forward.7} parent=11 // pred_region
        _
      $region28: #{text_only_forward.7} parent=11 // pred_fallthru
        _
      // Predicated region
      $region29: #{text_only_forward.7} parent=11 // pred_check
        %p245 = pneg %p171
      $region30: #{text_only_forward.7} parent=11 // pred_check_branch
        %247 = sbr.rel (%p245) target = $region32
      $region31: #{text_only_forward.7} parent=11 // pred_region
        _
      $region32: #{text_only_forward.7} parent=11 // pred_fallthru
        _
      // Predicated region
      $region33: #{text_only_forward.7} parent=11 // pred_check
        %p248 = pneg %p192
      $region34: #{text_only_forward.7} parent=11 // pred_check_branch
        %250 = sbr.rel (%p248) target = $region36
      $region35: #{text_only_forward.7} parent=11 // pred_region
        _
      $region36: #{text_only_forward.7} parent=11 // pred_fallthru
        _
    $region12: #{text_only_forward.7} parent=5 // pred_fallthru
      _
    %p251 = scmp.lt.s32.totalorder %s14, 2
    // Predicated region
    $region37: #{text_only_forward.7} parent=5 // pred_check
      %p252 = pneg %p251
    $region38: #{text_only_forward.7} parent=5 // pred_check_branch
      %254 = sbr.rel (%p252) target = $region40
    $region39: #{text_only_forward.7} parent=5 // pred_region
      // Predicated region
      $region41: #{text_only_forward.7} parent=39 // pred_check
        %p255 = pneg %p34
      $region42: #{text_only_forward.7} parent=39 // pred_check_branch
        %257 = sbr.rel (%p255) target = $region44
      $region43: #{text_only_forward.7} parent=39 // pred_region
        %p258 = scmp.lt.s32.totalorder %s14, 1
        %s259 = scalar_select %p258, %s14, 1
        %s260 = smul.addr %s259, 4
        %s261 = scalar_lea.vmem %s0, %s260
      $region44: #{text_only_forward.7} parent=39 // pred_fallthru
        _
      // Predicated region
      $region45: #{text_only_forward.7} parent=39 // pred_check
        %p262 = pneg %p60
      $region46: #{text_only_forward.7} parent=39 // pred_check_branch
        %264 = sbr.rel (%p262) target = $region48
      $region47: #{text_only_forward.7} parent=39 // pred_region
        %p265 = scmp.lt.s32.totalorder %s14, 1
        %s266 = scalar_select %p265, %s14, 1
        %s267 = scalar_lea.vmem %s1, %s266
      $region48: #{text_only_forward.7} parent=39 // pred_fallthru
        _
    $region40: #{text_only_forward.7} parent=5 // pred_fallthru
      _
    %p268 = scmp.le.s32.totalorder 1, %s14
    %p269 = scmp.lt.s32.totalorder %s14, 3
    %p270 = pnand %p268, %p269
    %p271 = pneg %p270
    // Predicated region
    $region49: #{text_only_forward.7} parent=5 // pred_check
      _
    $region50: #{text_only_forward.7} parent=5 // pred_check_branch
      %273 = sbr.rel (%p270) target = $region52
    $region51: #{text_only_forward.7} parent=5 // pred_region
      %s274 = ssub.s32 %s14, 1
      %p275 = scmp.lt.s32.totalorder %s19, 1
      %s276 = scalar_select %p275, %s19, 1
      %s277 = smul.addr %s276, 4
      %s278 = scalar_lea.vmem %s0, %s277
      %p279 = pneg %p40
      %p280 = pneg %p37
      %p281 = scmp.lt.s32.totalorder %s19, 1
      %s282 = scalar_select %p281, %s19, 1
      %s283 = scalar_lea.vmem %s1, %s282
      %p284 = pneg %p66
      %p285 = pneg %p63
      %p286 = pneg %p87
      %p287 = pneg %p84
      %p288 = pneg %p108
      %p289 = pneg %p105
      %p290 = pneg %p129
      %p291 = pneg %p126
      %p292 = pneg %p150
      %p293 = pneg %p147
      %p294 = pneg %p171
      %p295 = pneg %p168
      %p296 = pneg %p192
      %p297 = pneg %p189
      %p298 = pneg %p218
      %p299 = pneg %p215
      %p300 = scmp.lt.s32.totalorder %s19, 1
      %s301 = scalar_select %p300, %s19, 1
      %s302 = smul.addr %s301, 4
      %s303 = scalar_lea.vmem %s8, %s302
      %p304 = scmp.lt.s32.totalorder %s19, 1
      %s305 = scalar_select %p304, %s19, 1
      %s306 = smul.addr %s305, 4
      %s307 = scalar_lea.vmem %s0, %s306
      %p308 = scmp.lt.s32.totalorder %s19, 1
      %s309 = scalar_select %p308, %s19, 1
      %s310 = scalar_lea.vmem %s1, %s309
      %p311 = scmp.lt.s32.totalorder %s19, 1
      %s312 = scalar_select %p311, %s19, 1
      %s313 = smul.addr %s312, 4
      %s314 = scalar_lea.vmem %s8, %s313
      %v316 = vld [vmem:[%s307] sm:$0xf]
      %v317 = vld [vmem:[%s2] sm:$0xf]
      %v318 = vld [vmem:[%s2 + $0x4] sm:$0xf]
      %v319 = vld [vmem:[%s2 + $0x8] sm:$0xf]
      %v320 = vld [vmem:[%s2 + $0xc] sm:$0xf]
      %v321 = vld [vmem:[%s3] sm:$0x1]
      %v323 = vlaneseq
      %v324 = vshrl.u32 %v323, 7
      %v325 = vsub.s32 0, %v324
      %v326 = vrot.slane %v321, %v325
      %v332 = vunpack.c.l.b16 %v317
      %v333 = vunpack.c.l.b16 %v318
      %v334 = vunpack.c.l.b16 %v319
      %v335 = vunpack.c.l.b16 %v320
      %v336 = vpack.c.b16 %v333, %v332
      %v337 = vpack.c.b16 %v335, %v334
      %vm340 = vcmask 261120
      %v342 = vsel %vm340, %v316, 0
      %344 = vmatprep.subr.bf16.mxu0 0
      %345 = vmatpush1.bf16.msra.mxu0 0
      %346 = vmatprep.subr.bf16.mxu0 0
      %347 = vmatpush1.bf16.msra.mxu0 0
      %348 = vmatprep.subr.bf16.mxu0 0
      %349 = vmatpush1.bf16.msra.mxu0 0
      %350 = vmatprep.subr.bf16.mxu0 0
      %351 = vmatpush1.bf16.msra.mxu0 0
      %352 = vmatprep.subr.bf16.mxu0 0
      %353 = vmatpush1.bf16.msra.mxu0 0
      %354 = vmatprep.subr.bf16.mxu0 0
      %355 = vmatpush1.bf16.msra.mxu0 0
      %356 = vmatprep.subr.bf16.mxu0 0
      %357 = vmatpush1.bf16.msra.mxu0 %v337
      %358 = vmatprep.subr.bf16.mxu0 0
      %359 = vmatpush1.bf16.msra.mxu0 %v336
      %360 = vmatprep.subr.bf16.mxu0 0
      %361 = vmatpush2.bf16.msra.mxu0 0
      %362 = vmatprep.subr.bf16.mxu0 0
      %363 = vmatpush2.bf16.msra.mxu0 0
      %364 = vmatprep.subr.bf16.mxu0 0
      %365 = vmatpush2.bf16.msra.mxu0 0
      %366 = vmatprep.subr.bf16.mxu0 0
      %367 = vmatpush2.bf16.msra.mxu0 0
      %368 = vmatprep.subr.bf16.mxu0 0
      %369 = vmatpush2.bf16.msra.mxu0 0
      %370 = vmatprep.subr.bf16.mxu0 0
      %371 = vmatpush2.bf16.msra.mxu0 0
      %372 = vmatprep.subr.bf16.mxu0 0
      %373 = vmatpush2.bf16.msra.mxu0 0
      %374 = vmatprep.subr.bf16.mxu0 0
      %375 = vmatpush2.bf16.msra.mxu0 0
      %376 = vmatprep.mubr.bf16.mxu0 0
      %377 = vmatmul.mubr.bf16.gmra.mxu0 %v342
      %v378 = vpop.f32.mrf.mxu0
      %v379 = vadd.f32 %v326, %v378
      %v380 = vpop.f32.mrf.mxu0
      %v381 = vpop.f32.mrf.mxu0
      %v382 = vpop.f32.mrf.mxu0
      %383 = vdwg.mxu0
      %v384 = vld [vmem:[%s310] sm:$0x1]
      %v385 = vsub.f32 1.0, %v384
      %v386 = vmul.f32 %v385, -1e+09
      %v387 = vpack.c.bf16 %v379, %v379
      %389 = vrot.lane.b32.xlu0 %v387, 96
      %v390 = vpop.permute.xlu0 %389
      %vm391 = vcmask 64512
      %v393 = vsel %vm391, %v387, 0
      %v396 = vsel %vm391, %v390, 0
      %398 = vmatprep.subr.bf16.mxu0 0
      %399 = vmatpush1.bf16.xpose.msra.mxu0 0
      %400 = vmatprep.subr.bf16.mxu0 0
      %401 = vmatpush1.bf16.xpose.msra.mxu0 0
      %402 = vmatprep.subr.bf16.mxu0 0
      %403 = vmatpush1.bf16.xpose.msra.mxu0 0
      %404 = vmatprep.subr.bf16.mxu0 0
      %405 = vmatpush1.bf16.xpose.msra.mxu0 0
      %406 = vmatprep.subr.bf16.mxu0 0
      %407 = vmatpush1.bf16.xpose.msra.mxu0 0
      %408 = vmatprep.subr.bf16.mxu0 0
      %409 = vmatpush1.bf16.xpose.msra.mxu0 0
      %410 = vmatprep.subr.bf16.mxu0 0
      %411 = vmatpush1.bf16.xpose.msra.mxu0 0
      %412 = vmatprep.subr.bf16.mxu0 0
      %413 = vmatpush1.bf16.xpose.msra.mxu0 %v396
      %414 = vmatprep.subr.bf16.mxu0 0
      %415 = vmatpush2.bf16.xpose.msra.mxu0 0
      %416 = vmatprep.subr.bf16.mxu0 0
      %417 = vmatpush2.bf16.xpose.msra.mxu0 0
      %418 = vmatprep.subr.bf16.mxu0 0
      %419 = vmatpush2.bf16.xpose.msra.mxu0 0
      %420 = vmatprep.subr.bf16.mxu0 0
      %421 = vmatpush2.bf16.xpose.msra.mxu0 0
      %422 = vmatprep.subr.bf16.mxu0 0
      %423 = vmatpush2.bf16.xpose.msra.mxu0 0
      %424 = vmatprep.subr.bf16.mxu0 0
      %425 = vmatpush2.bf16.xpose.msra.mxu0 0
      %426 = vmatprep.subr.bf16.mxu0 0
      %427 = vmatpush2.bf16.xpose.msra.mxu0 0
      %428 = vmatprep.subr.bf16.mxu0 0
      %429 = vmatpush2.bf16.xpose.msra.mxu0 0
      %430 = vmatprep.mubr.bf16.mxu0 0
      %431 = vmatmul.mubr.bf16.gmra.mxu0 %v393
      %v432 = vpop.f32.mrf.mxu0
      %v433 = vadd.f32 0.0, %v432
      %v434 = vpop.f32.mrf.mxu0
      %v435 = vpop.f32.mrf.mxu0
      %v436 = vpop.f32.mrf.mxu0
      %437 = vdwg.mxu0
      %v438 = vmul.f32 %v433, 0.35355338
      %v440 = vlaneseq
      %v441 = vshrl.u32 %v440, 7
      %v442 = vsub.s32 0, %v441
      %v443 = vrot.slane %v386, %v442
      %v445 = vadd.f32 %v438, %v443
      %v446 = vsel %vm391, %v445, -inf
      %447 = vmax.xlane.f32.xlu0 %v446
      %v448 = vpop.xlane.xlu0 %447
      %v449 = vsub.f32 %v445, %v448
      %v450 = vmul.f32 %v449, 1.442695
      %v451 = vpow.pop %v450
      %v452 = vsel %vm391, %v451, 0.0
      %453 = vadd.xlane.f32.xlu0 %v452
      %v454 = vpop.xlane.xlu0 %453
      %v455 = vrcp.pop %v454
      %v456 = vmul.f32 %v451, %v455
      %v457 = vpack.c.bf16 %v456, %v456
      %458 = vrot.lane.b32.xlu0 %v387, 64
      %v459 = vpop.permute.xlu0 %458
      %v461 = vsel %vm391, %v457, 0
      %vm463 = vcmask 1043456
      %v465 = vsel %vm463, %v459, 0
      %467 = vmatprep.subr.bf16.mxu0 0
      %468 = vmatpush1.bf16.msra.mxu0 0
      %469 = vmatprep.subr.bf16.mxu0 0
      %470 = vmatpush1.bf16.msra.mxu0 0
      %471 = vmatprep.subr.bf16.mxu0 0
      %472 = vmatpush1.bf16.msra.mxu0 0
      %473 = vmatprep.subr.bf16.mxu0 0
      %474 = vmatpush1.bf16.msra.mxu0 0
      %475 = vmatprep.subr.bf16.mxu0 0
      %476 = vmatpush1.bf16.msra.mxu0 0
      %477 = vmatprep.subr.bf16.mxu0 0
      %478 = vmatpush1.bf16.msra.mxu0 0
      %479 = vmatprep.subr.bf16.mxu0 0
      %480 = vmatpush1.bf16.msra.mxu0 0
      %481 = vmatprep.subr.bf16.mxu0 0
      %482 = vmatpush1.bf16.msra.mxu0 %v465
      %483 = vmatprep.subr.bf16.mxu0 0
      %484 = vmatpush2.bf16.msra.mxu0 0
      %485 = vmatprep.subr.bf16.mxu0 0
      %486 = vmatpush2.bf16.msra.mxu0 0
      %487 = vmatprep.subr.bf16.mxu0 0
      %488 = vmatpush2.bf16.msra.mxu0 0
      %489 = vmatprep.subr.bf16.mxu0 0
      %490 = vmatpush2.bf16.msra.mxu0 0
      %491 = vmatprep.subr.bf16.mxu0 0
      %492 = vmatpush2.bf16.msra.mxu0 0
      %493 = vmatprep.subr.bf16.mxu0 0
      %494 = vmatpush2.bf16.msra.mxu0 0
      %495 = vmatprep.subr.bf16.mxu0 0
      %496 = vmatpush2.bf16.msra.mxu0 0
      %497 = vmatprep.subr.bf16.mxu0 0
      %498 = vmatpush2.bf16.msra.mxu0 0
      %499 = vmatprep.mubr.bf16.mxu0 0
      %500 = vmatmul.mubr.bf16.gmra.mxu0 %v461
      %v501 = vpop.f32.mrf.mxu0
      %v502 = vadd.f32 0.0, %v501
      %v503 = vpop.f32.mrf.mxu0
      %v504 = vpop.f32.mrf.mxu0
      %v505 = vpop.f32.mrf.mxu0
      %506 = vdwg.mxu0
      %v507 = vld [vmem:[%s4] sm:$0xf]
      %v508 = vpack.c.bf16 %v502, %v502
      %509 = vrot.lane.b32.xlu0 %v387, 120
      %v510 = vpop.permute.xlu0 %509
      %511 = vrot.lane.b32.xlu0 %v387, 88
      %v512 = vpop.permute.xlu0 %511
      %v514 = vsel %vm391, %v510, 0
      %v517 = vsel %vm391, %v512, 0
      %519 = vmatprep.subr.bf16.mxu0 0
      %520 = vmatpush1.bf16.xpose.msra.mxu0 0
      %521 = vmatprep.subr.bf16.mxu0 0
      %522 = vmatpush1.bf16.xpose.msra.mxu0 0
      %523 = vmatprep.subr.bf16.mxu0 0
      %524 = vmatpush1.bf16.xpose.msra.mxu0 0
      %525 = vmatprep.subr.bf16.mxu0 0
      %526 = vmatpush1.bf16.xpose.msra.mxu0 0
      %527 = vmatprep.subr.bf16.mxu0 0
      %528 = vmatpush1.bf16.xpose.msra.mxu0 0
      %529 = vmatprep.subr.bf16.mxu0 0
      %530 = vmatpush1.bf16.xpose.msra.mxu0 0
      %531 = vmatprep.subr.bf16.mxu0 0
      %532 = vmatpush1.bf16.xpose.msra.mxu0 0
      %533 = vmatprep.subr.bf16.mxu0 0
      %534 = vmatpush1.bf16.xpose.msra.mxu0 %v517
      %535 = vmatprep.subr.bf16.mxu0 0
      %536 = vmatpush2.bf16.xpose.msra.mxu0 0
      %537 = vmatprep.subr.bf16.mxu0 0
      %538 = vmatpush2.bf16.xpose.msra.mxu0 0
      %539 = vmatprep.subr.bf16.mxu0 0
      %540 = vmatpush2.bf16.xpose.msra.mxu0 0
      %541 = vmatprep.subr.bf16.mxu0 0
      %542 = vmatpush2.bf16.xpose.msra.mxu0 0
      %543 = vmatprep.subr.bf16.mxu0 0
      %544 = vmatpush2.bf16.xpose.msra.mxu0 0
      %545 = vmatprep.subr.bf16.mxu0 0
      %546 = vmatpush2.bf16.xpose.msra.mxu0 0
      %547 = vmatprep.subr.bf16.mxu0 0
      %548 = vmatpush2.bf16.xpose.msra.mxu0 0
      %549 = vmatprep.subr.bf16.mxu0 0
      %550 = vmatpush2.bf16.xpose.msra.mxu0 0
      %551 = vmatprep.mubr.bf16.mxu0 0
      %552 = vmatmul.mubr.bf16.gmra.mxu0 %v514
      %v553 = vpop.f32.mrf.mxu0
      %v554 = vadd.f32 0.0, %v553
      %v555 = vpop.f32.mrf.mxu0
      %v556 = vpop.f32.mrf.mxu0
      %v557 = vpop.f32.mrf.mxu0
      %558 = vdwg.mxu0
      %v559 = vmul.f32 %v554, 0.35355338
      %v560 = vadd.f32 %v559, %v443
      %v561 = vsel %vm391, %v560, -inf
      %562 = vmax.xlane.f32.xlu0 %v561
      %v563 = vpop.xlane.xlu0 %562
      %v564 = vsub.f32 %v560, %v563
      %v565 = vmul.f32 %v564, 1.442695
      %v566 = vpow.pop %v565
      %v567 = vsel %vm391, %v566, 0.0
      %568 = vadd.xlane.f32.xlu0 %v567
      %v569 = vpop.xlane.xlu0 %568
      %v570 = vrcp.pop %v569
      %v571 = vmul.f32 %v566, %v570
      %v572 = vpack.c.bf16 %v571, %v571
      %573 = vrot.lane.b32.xlu0 %v387, 56
      %v574 = vpop.permute.xlu0 %573
      %v576 = vsel %vm391, %v572, 0
      %v579 = vsel %vm463, %v574, 0
      %581 = vmatprep.subr.bf16.mxu0 0
      %582 = vmatpush1.bf16.msra.mxu0 0
      %583 = vmatprep.subr.bf16.mxu0 0
      %584 = vmatpush1.bf16.msra.mxu0 0
      %585 = vmatprep.subr.bf16.mxu0 0
      %586 = vmatpush1.bf16.msra.mxu0 0
      %587 = vmatprep.subr.bf16.mxu0 0
      %588 = vmatpush1.bf16.msra.mxu0 0
      %589 = vmatprep.subr.bf16.mxu0 0
      %590 = vmatpush1.bf16.msra.mxu0 0
      %591 = vmatprep.subr.bf16.mxu0 0
      %592 = vmatpush1.bf16.msra.mxu0 0
      %593 = vmatprep.subr.bf16.mxu0 0
      %594 = vmatpush1.bf16.msra.mxu0 0
      %595 = vmatprep.subr.bf16.mxu0 0
      %596 = vmatpush1.bf16.msra.mxu0 %v579
      %597 = vmatprep.subr.bf16.mxu0 0
      %598 = vmatpush2.bf16.msra.mxu0 0
      %599 = vmatprep.subr.bf16.mxu0 0
      %600 = vmatpush2.bf16.msra.mxu0 0
      %601 = vmatprep.subr.bf16.mxu0 0
      %602 = vmatpush2.bf16.msra.mxu0 0
      %603 = vmatprep.subr.bf16.mxu0 0
      %604 = vmatpush2.bf16.msra.mxu0 0
      %605 = vmatprep.subr.bf16.mxu0 0
      %606 = vmatpush2.bf16.msra.mxu0 0
      %607 = vmatprep.subr.bf16.mxu0 0
      %608 = vmatpush2.bf16.msra.mxu0 0
      %609 = vmatprep.subr.bf16.mxu0 0
      %610 = vmatpush2.bf16.msra.mxu0 0
      %611 = vmatprep.subr.bf16.mxu0 0
      %612 = vmatpush2.bf16.msra.mxu0 0
      %613 = vmatprep.mubr.bf16.mxu0 0
      %614 = vmatmul.mubr.bf16.gmra.mxu0 %v576
      %v615 = vpop.f32.mrf.mxu0
      %v616 = vadd.f32 0.0, %v615
      %v617 = vpop.f32.mrf.mxu0
      %v618 = vpop.f32.mrf.mxu0
      %v619 = vpop.f32.mrf.mxu0
      %620 = vdwg.mxu0
      %v621 = vld [vmem:[%s4 + $0x4] sm:$0xf]
      %v622 = vpack.c.bf16 %v616, %v616
      %v624 = vsel %vm391, %v622, 0
      %v627 = vsel %vm463, %v621, 0
      %629 = vmatprep.subr.bf16.mxu0 0
      %630 = vmatpush1.bf16.msra.mxu0 0
      %631 = vmatprep.subr.bf16.mxu0 0
      %632 = vmatpush1.bf16.msra.mxu0 0
      %633 = vmatprep.subr.bf16.mxu0 0
      %634 = vmatpush1.bf16.msra.mxu0 0
      %635 = vmatprep.subr.bf16.mxu0 0
      %636 = vmatpush1.bf16.msra.mxu0 0
      %637 = vmatprep.subr.bf16.mxu0 0
      %638 = vmatpush1.bf16.msra.mxu0 0
      %639 = vmatprep.subr.bf16.mxu0 0
      %640 = vmatpush1.bf16.msra.mxu0 0
      %641 = vmatprep.subr.bf16.mxu0 0
      %642 = vmatpush1.bf16.msra.mxu0 0
      %643 = vmatprep.subr.bf16.mxu0 0
      %644 = vmatpush1.bf16.msra.mxu0 %v627
      %645 = vmatprep.subr.bf16.mxu0 0
      %646 = vmatpush2.bf16.msra.mxu0 0
      %647 = vmatprep.subr.bf16.mxu0 0
      %648 = vmatpush2.bf16.msra.mxu0 0
      %649 = vmatprep.subr.bf16.mxu0 0
      %650 = vmatpush2.bf16.msra.mxu0 0
      %651 = vmatprep.subr.bf16.mxu0 0
      %652 = vmatpush2.bf16.msra.mxu0 0
      %653 = vmatprep.subr.bf16.mxu0 0
      %654 = vmatpush2.bf16.msra.mxu0 0
      %655 = vmatprep.subr.bf16.mxu0 0
      %656 = vmatpush2.bf16.msra.mxu0 0
      %657 = vmatprep.subr.bf16.mxu0 0
      %658 = vmatpush2.bf16.msra.mxu0 0
      %659 = vmatprep.subr.bf16.mxu0 0
      %660 = vmatpush2.bf16.msra.mxu0 0
      %661 = vmatprep.mubr.bf16.mxu0 0
      %662 = vmatmul.mubr.bf16.gmra.mxu0 %v624
      %v663 = vpop.f32.mrf.mxu0
      %v664 = vadd.f32 0.0, %v663
      %v665 = vpop.f32.mrf.mxu0
      %v666 = vpop.f32.mrf.mxu0
      %v667 = vpop.f32.mrf.mxu0
      %668 = vdwg.mxu0
      %v670 = vsel %vm391, %v508, 0
      %v673 = vsel %vm463, %v507, 0
      %675 = vmatprep.subr.bf16.mxu0 0
      %676 = vmatpush1.bf16.msra.mxu0 0
      %677 = vmatprep.subr.bf16.mxu0 0
      %678 = vmatpush1.bf16.msra.mxu0 0
      %679 = vmatprep.subr.bf16.mxu0 0
      %680 = vmatpush1.bf16.msra.mxu0 0
      %681 = vmatprep.subr.bf16.mxu0 0
      %682 = vmatpush1.bf16.msra.mxu0 0
      %683 = vmatprep.subr.bf16.mxu0 0
      %684 = vmatpush1.bf16.msra.mxu0 0
      %685 = vmatprep.subr.bf16.mxu0 0
      %686 = vmatpush1.bf16.msra.mxu0 0
      %687 = vmatprep.subr.bf16.mxu0 0
      %688 = vmatpush1.bf16.msra.mxu0 0
      %689 = vmatprep.subr.bf16.mxu0 0
      %690 = vmatpush1.bf16.msra.mxu0 %v673
      %691 = vmatprep.subr.bf16.mxu0 0
      %692 = vmatpush2.bf16.msra.mxu0 0
      %693 = vmatprep.subr.bf16.mxu0 0
      %694 = vmatpush2.bf16.msra.mxu0 0
      %695 = vmatprep.subr.bf16.mxu0 0
      %696 = vmatpush2.bf16.msra.mxu0 0
      %697 = vmatprep.subr.bf16.mxu0 0
      %698 = vmatpush2.bf16.msra.mxu0 0
      %699 = vmatprep.subr.bf16.mxu0 0
      %700 = vmatpush2.bf16.msra.mxu0 0
      %701 = vmatprep.subr.bf16.mxu0 0
      %702 = vmatpush2.bf16.msra.mxu0 0
      %703 = vmatprep.subr.bf16.mxu0 0
      %704 = vmatpush2.bf16.msra.mxu0 0
      %705 = vmatprep.subr.bf16.mxu0 0
      %706 = vmatpush2.bf16.msra.mxu0 0
      %707 = vmatprep.mubr.bf16.mxu0 0
      %708 = vmatmul.mubr.bf16.gmra.mxu0 %v670
      %v709 = vpop.f32.mrf.mxu0
      %v710 = vadd.f32 %v664, %v709
      %v711 = vpop.f32.mrf.mxu0
      %v712 = vpop.f32.mrf.mxu0
      %v713 = vpop.f32.mrf.mxu0
      %714 = vdwg.mxu0
      %715 = vrot.lane.b32.xlu0 %v387, 112
      %v716 = vpop.permute.xlu0 %715
      %717 = vrot.lane.b32.xlu0 %v387, 80
      %v718 = vpop.permute.xlu0 %717
      %v720 = vsel %vm391, %v716, 0
      %v723 = vsel %vm391, %v718, 0
      %725 = vmatprep.subr.bf16.mxu0 0
      %726 = vmatpush1.bf16.xpose.msra.mxu0 0
      %727 = vmatprep.subr.bf16.mxu0 0
      %728 = vmatpush1.bf16.xpose.msra.mxu0 0
      %729 = vmatprep.subr.bf16.mxu0 0
      %730 = vmatpush1.bf16.xpose.msra.mxu0 0
      %731 = vmatprep.subr.bf16.mxu0 0
      %732 = vmatpush1.bf16.xpose.msra.mxu0 0
      %733 = vmatprep.subr.bf16.mxu0 0
      %734 = vmatpush1.bf16.xpose.msra.mxu0 0
      %735 = vmatprep.subr.bf16.mxu0 0
      %736 = vmatpush1.bf16.xpose.msra.mxu0 0
      %737 = vmatprep.subr.bf16.mxu0 0
      %738 = vmatpush1.bf16.xpose.msra.mxu0 0
      %739 = vmatprep.subr.bf16.mxu0 0
      %740 = vmatpush1.bf16.xpose.msra.mxu0 %v723
      %741 = vmatprep.subr.bf16.mxu0 0
      %742 = vmatpush2.bf16.xpose.msra.mxu0 0
      %743 = vmatprep.subr.bf16.mxu0 0
      %744 = vmatpush2.bf16.xpose.msra.mxu0 0
      %745 = vmatprep.subr.bf16.mxu0 0
      %746 = vmatpush2.bf16.xpose.msra.mxu0 0
      %747 = vmatprep.subr.bf16.mxu0 0
      %748 = vmatpush2.bf16.xpose.msra.mxu0 0
      %749 = vmatprep.subr.bf16.mxu0 0
      %750 = vmatpush2.bf16.xpose.msra.mxu0 0
      %751 = vmatprep.subr.bf16.mxu0 0
      %752 = vmatpush2.bf16.xpose.msra.mxu0 0
      %753 = vmatprep.subr.bf16.mxu0 0
      %754 = vmatpush2.bf16.xpose.msra.mxu0 0
      %755 = vmatprep.subr.bf16.mxu0 0
      %756 = vmatpush2.bf16.xpose.msra.mxu0 0
      %757 = vmatprep.mubr.bf16.mxu0 0
      %758 = vmatmul.mubr.bf16.gmra.mxu0 %v720
      %v759 = vpop.f32.mrf.mxu0
      %v760 = vadd.f32 0.0, %v759
      %v761 = vpop.f32.mrf.mxu0
      %v762 = vpop.f32.mrf.mxu0
      %v763 = vpop.f32.mrf.mxu0
      %764 = vdwg.mxu0
      %v765 = vmul.f32 %v760, 0.35355338
      %v766 = vadd.f32 %v765, %v443
      %v767 = vsel %vm391, %v766, -inf
      %768 = vmax.xlane.f32.xlu0 %v767
      %v769 = vpop.xlane.xlu0 %768
      %v770 = vsub.f32 %v766, %v769
      %v771 = vmul.f32 %v770, 1.442695
      %v772 = vpow.pop %v771
      %v773 = vsel %vm391, %v772, 0.0
      %774 = vadd.xlane.f32.xlu0 %v773
      %v775 = vpop.xlane.xlu0 %774
      %v776 = vrcp.pop %v775
      %v777 = vmul.f32 %v772, %v776
      %v778 = vpack.c.bf16 %v777, %v777
      %779 = vrot.lane.b32.xlu0 %v387, 48
      %v780 = vpop.permute.xlu0 %779
      %v782 = vsel %vm391, %v778, 0
      %v785 = vsel %vm463, %v780, 0
      %787 = vmatprep.subr.bf16.mxu0 0
      %788 = vmatpush1.bf16.msra.mxu0 0
      %789 = vmatprep.subr.bf16.mxu0 0
      %790 = vmatpush1.bf16.msra.mxu0 0
      %791 = vmatprep.subr.bf16.mxu0 0
      %792 = vmatpush1.bf16.msra.mxu0 0
      %793 = vmatprep.subr.bf16.mxu0 0
      %794 = vmatpush1.bf16.msra.mxu0 0
      %795 = vmatprep.subr.bf16.mxu0 0
      %796 = vmatpush1.bf16.msra.mxu0 0
      %797 = vmatprep.subr.bf16.mxu0 0
      %798 = vmatpush1.bf16.msra.mxu0 0
      %799 = vmatprep.subr.bf16.mxu0 0
      %800 = vmatpush1.bf16.msra.mxu0 0
      %801 = vmatprep.subr.bf16.mxu0 0
      %802 = vmatpush1.bf16.msra.mxu0 %v785
      %803 = vmatprep.subr.bf16.mxu0 0
      %804 = vmatpush2.bf16.msra.mxu0 0
      %805 = vmatprep.subr.bf16.mxu0 0
      %806 = vmatpush2.bf16.msra.mxu0 0
      %807 = vmatprep.subr.bf16.mxu0 0
      %808 = vmatpush2.bf16.msra.mxu0 0
      %809 = vmatprep.subr.bf16.mxu0 0
      %810 = vmatpush2.bf16.msra.mxu0 0
      %811 = vmatprep.subr.bf16.mxu0 0
      %812 = vmatpush2.bf16.msra.mxu0 0
      %813 = vmatprep.subr.bf16.mxu0 0
      %814 = vmatpush2.bf16.msra.mxu0 0
      %815 = vmatprep.subr.bf16.mxu0 0
      %816 = vmatpush2.bf16.msra.mxu0 0
      %817 = vmatprep.subr.bf16.mxu0 0
      %818 = vmatpush2.bf16.msra.mxu0 0
      %819 = vmatprep.mubr.bf16.mxu0 0
      %820 = vmatmul.mubr.bf16.gmra.mxu0 %v782
      %v821 = vpop.f32.mrf.mxu0
      %v822 = vadd.f32 0.0, %v821
      %v823 = vpop.f32.mrf.mxu0
      %v824 = vpop.f32.mrf.mxu0
      %v825 = vpop.f32.mrf.mxu0
      %826 = vdwg.mxu0
      %v827 = vld [vmem:[%s4 + $0x8] sm:$0xf]
      %v828 = vpack.c.bf16 %v822, %v822
      %v830 = vsel %vm391, %v828, 0
      %v833 = vsel %vm463, %v827, 0
      %835 = vmatprep.subr.bf16.mxu0 0
      %836 = vmatpush1.bf16.msra.mxu0 0
      %837 = vmatprep.subr.bf16.mxu0 0
      %838 = vmatpush1.bf16.msra.mxu0 0
      %839 = vmatprep.subr.bf16.mxu0 0
      %840 = vmatpush1.bf16.msra.mxu0 0
      %841 = vmatprep.subr.bf16.mxu0 0
      %842 = vmatpush1.bf16.msra.mxu0 0
      %843 = vmatprep.subr.bf16.mxu0 0
      %844 = vmatpush1.bf16.msra.mxu0 0
      %845 = vmatprep.subr.bf16.mxu0 0
      %846 = vmatpush1.bf16.msra.mxu0 0
      %847 = vmatprep.subr.bf16.mxu0 0
      %848 = vmatpush1.bf16.msra.mxu0 0
      %849 = vmatprep.subr.bf16.mxu0 0
      %850 = vmatpush1.bf16.msra.mxu0 %v833
      %851 = vmatprep.subr.bf16.mxu0 0
      %852 = vmatpush2.bf16.msra.mxu0 0
      %853 = vmatprep.subr.bf16.mxu0 0
      %854 = vmatpush2.bf16.msra.mxu0 0
      %855 = vmatprep.subr.bf16.mxu0 0
      %856 = vmatpush2.bf16.msra.mxu0 0
      %857 = vmatprep.subr.bf16.mxu0 0
      %858 = vmatpush2.bf16.msra.mxu0 0
      %859 = vmatprep.subr.bf16.mxu0 0
      %860 = vmatpush2.bf16.msra.mxu0 0
      %861 = vmatprep.subr.bf16.mxu0 0
      %862 = vmatpush2.bf16.msra.mxu0 0
      %863 = vmatprep.subr.bf16.mxu0 0
      %864 = vmatpush2.bf16.msra.mxu0 0
      %865 = vmatprep.subr.bf16.mxu0 0
      %866 = vmatpush2.bf16.msra.mxu0 0
      %867 = vmatprep.mubr.bf16.mxu0 0
      %868 = vmatmul.mubr.bf16.gmra.mxu0 %v830
      %v869 = vpop.f32.mrf.mxu0
      %v870 = vadd.f32 0.0, %v869
      %v871 = vpop.f32.mrf.mxu0
      %v872 = vpop.f32.mrf.mxu0
      %v873 = vpop.f32.mrf.mxu0
      %874 = vdwg.mxu0
      %v875 = vadd.f32 %v710, %v870
      %876 = vrot.lane.b32.xlu0 %v387, 104
      %v877 = vpop.permute.xlu0 %876
      %878 = vrot.lane.b32.xlu0 %v387, 72
      %v879 = vpop.permute.xlu0 %878
      %v881 = vsel %vm391, %v877, 0
      %v884 = vsel %vm391, %v879, 0
      %886 = vmatprep.subr.bf16.mxu0 0
      %887 = vmatpush1.bf16.xpose.msra.mxu0 0
      %888 = vmatprep.subr.bf16.mxu0 0
      %889 = vmatpush1.bf16.xpose.msra.mxu0 0
      %890 = vmatprep.subr.bf16.mxu0 0
      %891 = vmatpush1.bf16.xpose.msra.mxu0 0
      %892 = vmatprep.subr.bf16.mxu0 0
      %893 = vmatpush1.bf16.xpose.msra.mxu0 0
      %894 = vmatprep.subr.bf16.mxu0 0
      %895 = vmatpush1.bf16.xpose.msra.mxu0 0
      %896 = vmatprep.subr.bf16.mxu0 0
      %897 = vmatpush1.bf16.xpose.msra.mxu0 0
      %898 = vmatprep.subr.bf16.mxu0 0
      %899 = vmatpush1.bf16.xpose.msra.mxu0 0
      %900 = vmatprep.subr.bf16.mxu0 0
      %901 = vmatpush1.bf16.xpose.msra.mxu0 %v884
      %902 = vmatprep.subr.bf16.mxu0 0
      %903 = vmatpush2.bf16.xpose.msra.mxu0 0
      %904 = vmatprep.subr.bf16.mxu0 0
      %905 = vmatpush2.bf16.xpose.msra.mxu0 0
      %906 = vmatprep.subr.bf16.mxu0 0
      %907 = vmatpush2.bf16.xpose.msra.mxu0 0
      %908 = vmatprep.subr.bf16.mxu0 0
      %909 = vmatpush2.bf16.xpose.msra.mxu0 0
      %910 = vmatprep.subr.bf16.mxu0 0
      %911 = vmatpush2.bf16.xpose.msra.mxu0 0
      %912 = vmatprep.subr.bf16.mxu0 0
      %913 = vmatpush2.bf16.xpose.msra.mxu0 0
      %914 = vmatprep.subr.bf16.mxu0 0
      %915 = vmatpush2.bf16.xpose.msra.mxu0 0
      %916 = vmatprep.subr.bf16.mxu0 0
      %917 = vmatpush2.bf16.xpose.msra.mxu0 0
      %918 = vmatprep.mubr.bf16.mxu0 0
      %919 = vmatmul.mubr.bf16.gmra.mxu0 %v881
      %v920 = vpop.f32.mrf.mxu0
      %v921 = vadd.f32 0.0, %v920
      %v922 = vpop.f32.mrf.mxu0
      %v923 = vpop.f32.mrf.mxu0
      %v924 = vpop.f32.mrf.mxu0
      %925 = vdwg.mxu0
      %v926 = vmul.f32 %v921, 0.35355338
      %v927 = vadd.f32 %v926, %v443
      %v928 = vsel %vm391, %v927, -inf
      %929 = vmax.xlane.f32.xlu0 %v928
      %v930 = vpop.xlane.xlu0 %929
      %v931 = vsub.f32 %v927, %v930
      %v932 = vmul.f32 %v931, 1.442695
      %v933 = vpow.pop %v932
      %v934 = vsel %vm391, %v933, 0.0
      %935 = vadd.xlane.f32.xlu0 %v934
      %v936 = vpop.xlane.xlu0 %935
      %v937 = vrcp.pop %v936
      %v938 = vmul.f32 %v933, %v937
      %v939 = vpack.c.bf16 %v938, %v938
      %940 = vrot.lane.b32.xlu0 %v387, 40
      %v941 = vpop.permute.xlu0 %940
      %v943 = vsel %vm391, %v939, 0
      %v946 = vsel %vm463, %v941, 0
      %948 = vmatprep.subr.bf16.mxu0 0
      %949 = vmatpush1.bf16.msra.mxu0 0
      %950 = vmatprep.subr.bf16.mxu0 0
      %951 = vmatpush1.bf16.msra.mxu0 0
      %952 = vmatprep.subr.bf16.mxu0 0
      %953 = vmatpush1.bf16.msra.mxu0 0
      %954 = vmatprep.subr.bf16.mxu0 0
      %955 = vmatpush1.bf16.msra.mxu0 0
      %956 = vmatprep.subr.bf16.mxu0 0
      %957 = vmatpush1.bf16.msra.mxu0 0
      %958 = vmatprep.subr.bf16.mxu0 0
      %959 = vmatpush1.bf16.msra.mxu0 0
      %960 = vmatprep.subr.bf16.mxu0 0
      %961 = vmatpush1.bf16.msra.mxu0 0
      %962 = vmatprep.subr.bf16.mxu0 0
      %963 = vmatpush1.bf16.msra.mxu0 %v946
      %964 = vmatprep.subr.bf16.mxu0 0
      %965 = vmatpush2.bf16.msra.mxu0 0
      %966 = vmatprep.subr.bf16.mxu0 0
      %967 = vmatpush2.bf16.msra.mxu0 0
      %968 = vmatprep.subr.bf16.mxu0 0
      %969 = vmatpush2.bf16.msra.mxu0 0
      %970 = vmatprep.subr.bf16.mxu0 0
      %971 = vmatpush2.bf16.msra.mxu0 0
      %972 = vmatprep.subr.bf16.mxu0 0
      %973 = vmatpush2.bf16.msra.mxu0 0
      %974 = vmatprep.subr.bf16.mxu0 0
      %975 = vmatpush2.bf16.msra.mxu0 0
      %976 = vmatprep.subr.bf16.mxu0 0
      %977 = vmatpush2.bf16.msra.mxu0 0
      %978 = vmatprep.subr.bf16.mxu0 0
      %979 = vmatpush2.bf16.msra.mxu0 0
      %980 = vmatprep.mubr.bf16.mxu0 0
      %981 = vmatmul.mubr.bf16.gmra.mxu0 %v943
      %v982 = vpop.f32.mrf.mxu0
      %v983 = vadd.f32 0.0, %v982
      %v984 = vpop.f32.mrf.mxu0
      %v985 = vpop.f32.mrf.mxu0
      %v986 = vpop.f32.mrf.mxu0
      %987 = vdwg.mxu0
      %v988 = vld [vmem:[%s4 + $0xc] sm:$0xf]
      %v989 = vpack.c.bf16 %v983, %v983
      %v991 = vsel %vm391, %v989, 0
      %v994 = vsel %vm463, %v988, 0
      %996 = vmatprep.subr.bf16.mxu0 0
      %997 = vmatpush1.bf16.msra.mxu0 0
      %998 = vmatprep.subr.bf16.mxu0 0
      %999 = vmatpush1.bf16.msra.mxu0 0
      %1000 = vmatprep.subr.bf16.mxu0 0
      %1001 = vmatpush1.bf16.msra.mxu0 0
      %1002 = vmatprep.subr.bf16.mxu0 0
      %1003 = vmatpush1.bf16.msra.mxu0 0
      %1004 = vmatprep.subr.bf16.mxu0 0
      %1005 = vmatpush1.bf16.msra.mxu0 0
      %1006 = vmatprep.subr.bf16.mxu0 0
      %1007 = vmatpush1.bf16.msra.mxu0 0
      %1008 = vmatprep.subr.bf16.mxu0 0
      %1009 = vmatpush1.bf16.msra.mxu0 0
      %1010 = vmatprep.subr.bf16.mxu0 0
      %1011 = vmatpush1.bf16.msra.mxu0 %v994
      %1012 = vmatprep.subr.bf16.mxu0 0
      %1013 = vmatpush2.bf16.msra.mxu0 0
      %1014 = vmatprep.subr.bf16.mxu0 0
      %1015 = vmatpush2.bf16.msra.mxu0 0
      %1016 = vmatprep.subr.bf16.mxu0 0
      %1017 = vmatpush2.bf16.msra.mxu0 0
      %1018 = vmatprep.subr.bf16.mxu0 0
      %1019 = vmatpush2.bf16.msra.mxu0 0
      %1020 = vmatprep.subr.bf16.mxu0 0
      %1021 = vmatpush2.bf16.msra.mxu0 0
      %1022 = vmatprep.subr.bf16.mxu0 0
      %1023 = vmatpush2.bf16.msra.mxu0 0
      %1024 = vmatprep.subr.bf16.mxu0 0
      %1025 = vmatpush2.bf16.msra.mxu0 0
      %1026 = vmatprep.subr.bf16.mxu0 0
      %1027 = vmatpush2.bf16.msra.mxu0 0
      %1028 = vmatprep.mubr.bf16.mxu0 0
      %1029 = vmatmul.mubr.bf16.gmra.mxu0 %v991
      %v1030 = vpop.f32.mrf.mxu0
      %v1031 = vadd.f32 0.0, %v1030
      %v1032 = vpop.f32.mrf.mxu0
      %v1033 = vpop.f32.mrf.mxu0
      %v1034 = vpop.f32.mrf.mxu0
      %1035 = vdwg.mxu0
      %v1036 = vadd.f32 %v875, %v1031
      %v1037 = vld [vmem:[%s5] sm:$0x1]
      %v1039 = vlaneseq
      %v1040 = vshrl.u32 %v1039, 7
      %v1041 = vsub.s32 0, %v1040
      %v1042 = vrot.slane %v1037, %v1041
      %v1044 = vadd.f32 %v1036, %v1042
      %v1045 = vunpack.c.l.bf16 %v316
      %v1046 = vadd.f32 %v1044, %v1045
      %v1047 = vsel %vm340, %v1046, 0.0
      %1048 = vadd.xlane.f32.xlu0 %v1047
      %v1049 = vpop.xlane.xlu0 %1048
      %v1050 = vrcp.pop 32.0
      %v1051 = vmul.f32 %v1049, %v1050
      %v1052 = vsub.f32 %v1046, %v1051
      %v1053 = vmul.f32 %v1052, %v1052
      %v1054 = vsel %vm340, %v1053, 0.0
      %1055 = vadd.xlane.f32.xlu0 %v1054
      %v1056 = vpop.xlane.xlu0 %1055
      %v1057 = vmul.f32 %v1056, %v1050
      %v1058 = vadd.f32 %v1057, 1e-12
      %v1059 = vrsqrt.pop %v1058
      %v1060 = vmul.f32 %v1052, %v1059
      %v1061 = vld [vmem:[%s6] sm:$0x1]
      %v1063 = vlaneseq
      %v1064 = vshrl.u32 %v1063, 7
      %v1065 = vsub.s32 0, %v1064
      %v1066 = vrot.slane %v1061, %v1065
      %v1068 = vmul.f32 %v1060, %v1066
      %v1069 = vld [vmem:[%s7] sm:$0x1]
      %v1071 = vlaneseq
      %v1072 = vshrl.u32 %v1071, 7
      %v1073 = vsub.s32 0, %v1072
      %v1074 = vrot.slane %v1069, %v1073
      %v1076 = vadd.f32 %v1068, %v1074
      %v1077 = vpack.c.bf16 %v1076, %v1076
      %vm1078 = vcmask 257024
      %1079 = vst.msk [vmem:[%s314] sm:$0xf] %vm1078, %v1077
      %p1080 = scmp.lt.s32.totalorder %s19, 1
      %s1081 = scalar_select %p1080, %s19, 1
      %s1082 = smul.addr %s1081, 4
      %s1083 = scalar_lea.vmem %s8, %s1082
      // Predicated region
      $region53: #{text_only_forward.7} parent=51 // pred_check
        %p1084 = pneg %p215
      $region54: #{text_only_forward.7} parent=51 // pred_check_branch
        %1086 = sbr.rel (%p1084) target = $region56
      $region55: #{text_only_forward.7} parent=51 // pred_region
        _
      $region56: #{text_only_forward.7} parent=51 // pred_fallthru
        _
    $region52: #{text_only_forward.7} parent=5 // pred_fallthru
      _
    %p1087 = scmp.le.s32.totalorder 2, %s14
    // Predicated region
    $region57: #{text_only_forward.7} parent=5 // pred_check
      %p1088 = pneg %p1087
    $region58: #{text_only_forward.7} parent=5 // pred_check_branch
      %1090 = sbr.rel (%p1088) target = $region60
    $region59: #{text_only_forward.7} parent=5 // pred_region
      %s1091 = ssub.s32 %s14, 2
      // Predicated region
      $region61: #{text_only_forward.7} parent=59 // pred_check
        %p1092 = pneg %p221
      $region62: #{text_only_forward.7} parent=59 // pred_check_branch
        %1094 = sbr.rel (%p1092) target = $region64
      $region63: #{text_only_forward.7} parent=59 // pred_region
        %p1095 = scmp.lt.s32.totalorder %s20, 1
        %s1096 = scalar_select %p1095, %s20, 1
        %s1097 = smul.addr %s1096, 4
        %s1098 = scalar_lea.vmem %s8, %s1097
      $region64: #{text_only_forward.7} parent=59 // pred_fallthru
        _
    $region60: #{text_only_forward.7} parent=5 // pred_fallthru
      _
  $region6: #{text_only_forward.7} parent=0 // loop_footer
    %s18 = sadd.s32 1, %s14
  $region7: #{text_only_forward.7} parent=0 // loop_footer_branch
    %13 = sbr.rel target = $region3
  $region8: #{text_only_forward.7} parent=0 // loop_exit
    _

</llo_original>
